<compile_context>
chip_gen: v5e
topology: v5e:2x2
jax: 0.10.0
libtpu: 0.0.40
codegen_flags: <defaults>
</compile_context>

<pallas_src>
import jax
import jax.numpy as jnp
from jax.experimental import pallas as pl
from jax.experimental.pallas import tpu as pltpu

EPS = 1e-5
LANE = 128


def _round_up(n, m):
    return ((n + m - 1) // m) * m


def _cdiv(a, b):
    return -(-a // b)


def _instance_norm(h, true_width):
    # Fused single-pass statistics (one sum + one sum-of-squares reduction).
    # Padded feature columns of h are exactly zero PRE-norm, so dividing by
    # the true (unpadded) width reproduces PyTorch InstanceNorm1d statistics.
    inv_n = 1.0 / float(true_width)
    s = jnp.sum(h, axis=-1, keepdims=True)
    ss = jnp.sum(h * h, axis=-1, keepdims=True)
    mean = s * inv_n
    var = jnp.maximum(ss * inv_n - mean * mean, 0.0)   # clamp E[x^2]-mean^2 >= 0
    return (h - mean) * jax.lax.rsqrt(var + EPS)


def make_discriminator_kernel(num_blocks, norms, true_widths, with_emb, out_cols):
    """Kernel args: (alphas[SMEM], x, w1, b1, ..., w_out, b_out, [emb,] out)."""

    def kernel(*refs):
        alpha_ref = refs[0]                              # SMEM (num_blocks,) f32
        x_ref = refs[1]                                  # bf16 (TILE_B, in_dim)
        wb_refs = refs[2:2 + 2 * (num_blocks + 1)]
        if with_emb:
            emb_ref, out_ref = refs[-2], refs[-1]
        else:
            out_ref = refs[-1]

        h = x_ref[...]                                   # bf16 feeds first matmul
        for i in range(num_blocks):
            w = wb_refs[2 * i][...]                      # bf16 (K_pad, N_pad)
            b = wb_refs[2 * i + 1][...]                  # f32  (1, N_pad)
            lhs = h if h.dtype == jnp.bfloat16 else h.astype(jnp.bfloat16)
            h = jnp.dot(lhs, w, preferred_element_type=jnp.float32) + b
            if norms[i] == 'instance':
                h = _instance_norm(h, true_widths[i])
            # norms[i] == 'none': nothing.  'batch' rejected in the wrapper.
            alpha = alpha_ref[i]                         # scalar read (SMEM path)
            h = jnp.where(h > 0, h, alpha * h)           # PReLU
            # nn.Dropout: identity in eval mode.

        if with_emb:
            emb_ref[...] = h.astype(emb_ref.dtype)

        wf = wb_refs[2 * num_blocks][...]
        bf = wb_refs[2 * num_blocks + 1][...]
        o = jnp.dot(h.astype(jnp.bfloat16), wf,
                    preferred_element_type=jnp.float32) + bf
        o = o[:, :out_cols]                              # no-op when lane-dense
        out_ref[...] = jax.nn.sigmoid(o).astype(out_ref.dtype)

    return kernel


def init_discriminator_params(key, input_size, output_size, layers_size, norm,
                              dropout):
    """Deterministic init mimicking PyTorch Linear defaults (U(-k, k), k=1/sqrt(fan_in))."""
    del dropout  # identity at inference
    dims = [input_size] + list(layers_size)
    keys = jax.random.split(key, len(layers_size) + 1)
    wbs = []
    for i in range(len(layers_size)):
        fan_in, fan_out = dims[i], dims[i + 1]
        k = 1.0 / float(fan_in) ** 0.5
        kw, kb = jax.random.split(keys[i])
        w = jax.random.uniform(kw, (fan_in, fan_out), jnp.float32, -k, k)
        b = jax.random.uniform(kb, (1, fan_out), jnp.float32, -k, k)
        wbs.append((w, b))
    # sigmoid head
    fan_in = layers_size[-1]
    k = 1.0 / float(fan_in) ** 0.5
    kw, kb = jax.random.split(keys[-1])
    w = jax.random.uniform(kw, (fan_in, output_size), jnp.float32, -k, k)
    b = jax.random.uniform(kb, (1, output_size), jnp.float32, -k, k)
    wbs.append((w, b))

    alphas = jnp.full((len(layers_size),), 0.25, jnp.float32)  # PReLU init
    return {'wbs': wbs, 'alphas': alphas, 'norms': tuple(norm)}


def _prepare_padded_params(params, input_size):
    """Zero-pad feature dims to lane multiples (128) and pre-cast weights to bf16.

    Zero-padded weight COLUMNS make padded pre-norm activation columns exactly
    zero; zero-padded weight ROWS make post-norm padded columns harmless in the
    next matmul.  Both paddings are required for correctness.
    """
    # TODO(synk): on v6e/v7x, widths between 129 and 255 could pad to 256 to fill
    # the 256-wide MXU; 128 is native on v5e and optimal for this small config.
    padded = []
    true_widths = []
    prev_pad = input_size  # first layer's K is unpadded (x is not feature-padded)
    for (w, b) in params['wbs']:
        k, n = w.shape
        n_pad = _round_up(n, LANE)
        w_p = jnp.zeros((prev_pad, n_pad), jnp.float32).at[:k, :n].set(w)
        b_p = jnp.zeros((1, n_pad), jnp.float32).at[:, :n].set(b)
        padded.append((w_p.astype(jnp.bfloat16), b_p))
        true_widths.append(n)
        prev_pad = n_pad
    return padded, true_widths


def discriminator_forward(params, x, *, return_embeddings=True, tile_b=1024,
                          out_dtype=jnp.bfloat16):
    wbs = params['wbs']
    norms = params['norms']
    num_blocks = len(wbs) - 1

    for nm in norms:
        if nm not in ('instance', 'none'):
            # TODO(synk): BatchNorm1d training-mode batch statistics not implemented
            # (batch tiling would also change its statistics).
            raise NotImplementedError("norm '%s' not supported" % nm)

    batch, in_dim = x.shape
    padded_wbs, true_widths = _prepare_padded_params(params, in_dim)
    emb_dim = wbs[num_blocks - 1][0].shape[1]
    out_dim = wbs[-1][0].shape[1]
    emb_pad = padded_wbs[num_blocks - 1][0].shape[1]
    out_pad = padded_wbs[-1][0].shape[1]
    max_pad = max(w.shape[1] for w, _ in padded_wbs)
    out_itemsize = jax.ShapeDtypeStruct((), out_dtype).dtype.itemsize

    # Head store width: lane-dense when emb is also written (emb dominates the
    # writeback); narrow (out_dim) otherwise, since it is then the whole write.
    out_cols = out_pad if return_embeddings else out_dim

    flat_wb = [a for wb in padded_wbs for a in wb]
    alphas1d = params['alphas'].reshape(num_blocks).astype(jnp.float32)

    # --- batch tiling --------------------------------------------------------
    # First matmul consumes bf16 anyway -> cast x once here (halves its HBM
    # traffic and removes a per-tile VPU cast in the kernel).
    x = x.astype(jnp.bfloat16)
    num_tiles = _cdiv(batch, tile_b)
    if _round_up(batch, 8) >= 16:
        num_tiles = max(num_tiles, 2)       # >=2 grid steps -> v7x megacore
    tile_b_eff = _round_up(_cdiv(batch, num_tiles), 8)

    # --- generation-aware VMEM budget ---------------------------------------
    try:
        vmem_cap = int(pltpu.get_tpu_info().vmem_capacity_bytes)
    except Exception:
        vmem_cap = 64 * 1024 * 1024         # conservative fallback (v7x physical)
    vmem_budget = int(vmem_cap * 0.75)      # ~25% headroom for compiler scratch

    weight_bytes = sum(a.size * a.dtype.itemsize for a in flat_wb)  # single-buffered

    def vmem_need(tb):
        io = 2 * tb * in_dim * 2                                    # x tile, bf16, 2 bufs
        io += 2 * tb * out_cols * out_itemsize
        if return_embeddings:
            io += 2 * tb * emb_pad * out_itemsize
        work = 6 * tb * max_pad * 4                                 # live f32 intermediates
        return weight_bytes + io + work

    while vmem_need(tile_b_eff) > vmem_budget and tile_b_eff > 8:
        tile_b_eff = max(8, _round_up(tile_b_eff // 2, 8))

    num_tiles = _cdiv(batch, tile_b_eff)
    b_pad = num_tiles * tile_b_eff
    if b_pad != batch:
        x = jnp.pad(x, ((0, b_pad - batch), (0, 0)))
    grid = (num_tiles,)

    vmem_limit = int(min(max(2 * vmem_need(tile_b_eff), 32 * 1024 * 1024),
                         vmem_budget))

    # Advisory cost estimate for XLA scheduling.
    flops = sum(2 * b_pad * w.shape[0] * w.shape[1] for w, _ in padded_wbs)
    n_inorm = sum(1 for nm in norms if nm == 'instance')
    transcendentals = b_pad * (out_cols + n_inorm)
    bytes_accessed = (
        x.size * x.dtype.itemsize
        + weight_bytes
        + alphas1d.size * alphas1d.dtype.itemsize
        + b_pad * out_cols * out_itemsize
        + (b_pad * emb_pad * out_itemsize if return_embeddings else 0))
    cost = pl.CostEstimate(flops=flops, transcendentals=transcendentals,
                           bytes_accessed=bytes_accessed)

    kernel = make_discriminator_kernel(num_blocks, norms, true_widths[:num_blocks],
                                       return_embeddings, out_cols)

    def build_and_run(use_pipeline_mode):
        # Grid-invariant weights: single buffer.  Streamed tiles: deeper
        # buffering only when the grid is long enough to benefit.
        weight_mode = pl.Buffered(1) if use_pipeline_mode else None
        stream_mode = (pl.Buffered(3)
                       if (use_pipeline_mode and num_tiles >= 4) else None)

        def spec(shape, index_map, mode):
            if mode is None:
                return pl.BlockSpec(shape, index_map)
            return pl.BlockSpec(shape, index_map, pipeline_mode=mode)

        in_specs = [
            pl.BlockSpec(memory_space=pltpu.MemorySpace.SMEM),        # PReLU alphas
            spec((tile_b_eff, in_dim), lambda i: (i, 0), stream_mode),  # x tile
        ]
        for a in flat_wb:                                             # VMEM-resident
            in_specs.append(spec(a.shape, lambda i: (0, 0), weight_mode))

        out_spec_out = spec((tile_b_eff, out_cols), lambda i: (i, 0), stream_mode)
        if return_embeddings:
            out_specs = (spec((tile_b_eff, emb_pad), lambda i: (i, 0), stream_mode),
                         out_spec_out)
            out_shape = (jax.ShapeDtypeStruct((b_pad, emb_pad), out_dtype),
                         jax.ShapeDtypeStruct((b_pad, out_cols), out_dtype))
        else:
            out_specs = out_spec_out
            out_shape = jax.ShapeDtypeStruct((b_pad, out_cols), out_dtype)

        return pl.pallas_call(
            kernel,
            grid=grid,
            in_specs=in_specs,
            out_specs=out_specs,
            out_shape=out_shape,
            compiler_params=pltpu.CompilerParams(
                dimension_semantics=("parallel",),
                vmem_limit_bytes=vmem_limit),
            cost_estimate=cost,
        )(alphas1d, x, *flat_wb)

    try:
        result = build_and_run(True)
    except Exception:
        # pipeline_mode (Buffered) unavailable on this jax version; default
        # double-buffering is still correct, just uses a bit more VMEM.
        result = build_and_run(False)

    if return_embeddings:
        emb, out = result
        return emb[:batch, :emb_dim], out[:batch, :out_dim]
    return result[:batch, :out_dim]


def discriminator_reference(params, x):
    """Pure-JAX reference matching the PyTorch forward (eval mode), with the
    same bf16 matmul operands / f32 accumulation as the kernel so the only
    deviations are bf16 matmul rounding and the bf16 output stores."""
    wbs = params['wbs']
    norms = params['norms']
    alphas = params['alphas']
    h = x.astype(jnp.float32)
    for i in range(len(wbs) - 1):
        w, b = wbs[i]
        h = jnp.dot(h.astype(jnp.bfloat16), w.astype(jnp.bfloat16),
                    preferred_element_type=jnp.float32) + b
        if norms[i] == 'instance':
            mean = h.mean(-1, keepdims=True)
            var = ((h - mean) ** 2).mean(-1, keepdims=True)
            h = (h - mean) / jnp.sqrt(var + EPS)
        h = jnp.where(h > 0, h, alphas[i] * h)
    wf, bf = wbs[-1]
    out = jax.nn.sigmoid(jnp.dot(h.astype(jnp.bfloat16), wf.astype(jnp.bfloat16),
                                 preferred_element_type=jnp.float32) + bf)
    return h, out


if __name__ == "__main__":
    # Small config: Discriminator(input_size=32, output_size=1,
    #                             layers_size=[64, 32],
    #                             norm=['instance', 'instance'],
    #                             dropout=[0.0, 0.0])
    key = jax.random.PRNGKey(0)
    k_param, k_x = jax.random.split(key)

    input_size, output_size = 32, 1
    layers_size = [64, 32]
    norm = ['instance', 'instance']
    dropout = [0.0, 0.0]
    batch = 16  # >= 16 so the wrapper builds a 2-step batch grid (megacore path)

    params = init_discriminator_params(k_param, input_size, output_size,
                                       layers_size, norm, dropout)
    x = jax.random.normal(k_x, (batch, input_size), jnp.float32)

    emb, out = discriminator_forward(params, x)
    jax.block_until_ready((emb, out))

    emb_ref, out_ref = discriminator_reference(params, x)
    assert emb.shape == (batch, layers_size[-1])
    assert out.shape == (batch, output_size)
    emb_err = float(jnp.max(jnp.abs(emb.astype(jnp.float32) - emb_ref)))
    out_err = float(jnp.max(jnp.abs(out.astype(jnp.float32) - out_ref)))
    # emb/out are stored as bf16 (halves HBM writeback); tolerances reflect
    # bf16 rounding of values that already went through bf16 matmuls.
    assert emb_err < 3e-2, emb_err
    assert out_err < 1e-2, out_err

    # return_embeddings=False path (narrow head store, no emb writeback).
    out_only = discriminator_forward(params, x, return_embeddings=False)
    jax.block_until_ready(out_only)
    assert out_only.shape == (batch, output_size)
    assert float(jnp.max(jnp.abs(out_only.astype(jnp.float32) - out_ref))) < 1e-2

    print("KERNEL_OK")
</pallas_src>

<mosaic_0001>
module attributes {stable_mosaic.version = 11 : i64} {
  func.func @kernel(%arg0: i32, %arg1: memref<2xf32, #tpu.memory_space<smem>>, %arg2: memref<8x32xbf16, #tpu.memory_space<vmem>>, %arg3: memref<32x128xbf16, #tpu.memory_space<vmem>>, %arg4: memref<1x128xf32, #tpu.memory_space<vmem>>, %arg5: memref<128x128xbf16, #tpu.memory_space<vmem>>, %arg6: memref<1x128xf32, #tpu.memory_space<vmem>>, %arg7: memref<128x128xbf16, #tpu.memory_space<vmem>>, %arg8: memref<1x128xf32, #tpu.memory_space<vmem>>, %arg9: memref<8x128xbf16, #tpu.memory_space<vmem>>, %arg10: memref<8x128xbf16, #tpu.memory_space<vmem>>) attributes {dimension_semantics = [#tpu.dimension_semantics<parallel>], iteration_bounds = array<i64: 2>, scalar_prefetch = 0 : i64, scratch_operands = 0 : i64, tpu.core_type = #tpu.core_type<tc>, window_params = [{transform_indices = @transform_0, window_bounds = array<i64: 2>}, {transform_indices = @transform_1, window_bounds = array<i64: 8, 32>}, {pipeline_mode = #tpu.pipeline_mode<synchronous>, transform_indices = @transform_2, window_bounds = array<i64: 32, 128>}, {pipeline_mode = #tpu.pipeline_mode<synchronous>, transform_indices = @transform_3, window_bounds = array<i64: 1, 128>}, {pipeline_mode = #tpu.pipeline_mode<synchronous>, transform_indices = @transform_4, window_bounds = array<i64: 128, 128>}, {pipeline_mode = #tpu.pipeline_mode<synchronous>, transform_indices = @transform_5, window_bounds = array<i64: 1, 128>}, {pipeline_mode = #tpu.pipeline_mode<synchronous>, transform_indices = @transform_6, window_bounds = array<i64: 128, 128>}, {pipeline_mode = #tpu.pipeline_mode<synchronous>, transform_indices = @transform_7, window_bounds = array<i64: 1, 128>}, {transform_indices = @transform_8, window_bounds = array<i64: 8, 128>}, {transform_indices = @transform_9, window_bounds = array<i64: 8, 128>}]} {
    %c0 = arith.constant 0 : index
    %c0_0 = arith.constant 0 : index
    %0 = vector.load %arg2[%c0, %c0_0] : memref<8x32xbf16, #tpu.memory_space<vmem>>, vector<8x32xbf16>
    %c0_1 = arith.constant 0 : index
    %c0_2 = arith.constant 0 : index
    %1 = vector.load %arg3[%c0_1, %c0_2] : memref<32x128xbf16, #tpu.memory_space<vmem>>, vector<32x128xbf16>
    %c0_3 = arith.constant 0 : index
    %c0_4 = arith.constant 0 : index
    %2 = vector.load %arg4[%c0_3, %c0_4] : memref<1x128xf32, #tpu.memory_space<vmem>>, vector<1x128xf32>
    %cst = arith.constant dense<0.000000e+00> : vector<8x128xf32>
    %3 = tpu.matmul %0, %1, %cst {dimension_numbers = #tpu.dot_dimension_numbers<[1], [0], [0], [1], [0, 0, 1, 1], [], []>} : vector<8x32xbf16>, vector<32x128xbf16>, vector<8x128xf32> -> vector<8x128xf32>
    %4 = vector.broadcast %2 : vector<1x128xf32> to vector<8x128xf32>
    %5 = arith.addf %3, %4 : vector<8x128xf32>
    %cst_5 = arith.constant dense<0.000000e+00> : vector<8xf32>
    %6 = vector.multi_reduction <add>, %5, %cst_5 [1] : vector<8x128xf32> to vector<8xf32>
    %7 = vector.shape_cast %6 : vector<8xf32> to vector<8x1xf32>
    %8 = arith.mulf %5, %5 : vector<8x128xf32>
    %cst_6 = arith.constant dense<0.000000e+00> : vector<8xf32>
    %9 = vector.multi_reduction <add>, %8, %cst_6 [1] : vector<8x128xf32> to vector<8xf32>
    %10 = vector.shape_cast %9 : vector<8xf32> to vector<8x1xf32>
    %cst_7 = arith.constant 1.562500e-02 : f32
    %11 = vector.broadcast %cst_7 : f32 to vector<8x1xf32>
    %12 = arith.mulf %7, %11 : vector<8x1xf32>
    %cst_8 = arith.constant 1.562500e-02 : f32
    %13 = vector.broadcast %cst_8 : f32 to vector<8x1xf32>
    %14 = arith.mulf %10, %13 : vector<8x1xf32>
    %15 = arith.mulf %12, %12 : vector<8x1xf32>
    %16 = arith.subf %14, %15 : vector<8x1xf32>
    %cst_9 = arith.constant 0.000000e+00 : f32
    %17 = vector.broadcast %cst_9 : f32 to vector<8x1xf32>
    %18 = arith.maximumf %16, %17 : vector<8x1xf32>
    %19 = vector.broadcast %12 : vector<8x1xf32> to vector<8x128xf32>
    %20 = arith.subf %5, %19 : vector<8x128xf32>
    %cst_10 = arith.constant 9.99999974E-6 : f32
    %21 = vector.broadcast %cst_10 : f32 to vector<8x1xf32>
    %22 = arith.addf %18, %21 : vector<8x1xf32>
    %23 = math.rsqrt %22 : vector<8x1xf32>
    %24 = vector.broadcast %23 : vector<8x1xf32> to vector<8x128xf32>
    %25 = arith.mulf %20, %24 : vector<8x128xf32>
    %c0_11 = arith.constant 0 : index
    %26 = memref.load %arg1[%c0_11] : memref<2xf32, #tpu.memory_space<smem>>
    %cst_12 = arith.constant 0.000000e+00 : f32
    %27 = vector.broadcast %cst_12 : f32 to vector<8x128xf32>
    %28 = arith.cmpf ogt, %25, %27 : vector<8x128xf32>
    %29 = vector.broadcast %26 : f32 to vector<8x128xf32>
    %30 = arith.mulf %29, %25 : vector<8x128xf32>
    %31 = arith.select %28, %25, %30 : vector<8x128xi1>, vector<8x128xf32>
    %c0_13 = arith.constant 0 : index
    %c0_14 = arith.constant 0 : index
    %32 = vector.load %arg5[%c0_13, %c0_14] : memref<128x128xbf16, #tpu.memory_space<vmem>>, vector<128x128xbf16>
    %c0_15 = arith.constant 0 : index
    %c0_16 = arith.constant 0 : index
    %33 = vector.load %arg6[%c0_15, %c0_16] : memref<1x128xf32, #tpu.memory_space<vmem>>, vector<1x128xf32>
    %34 = arith.truncf %31 : vector<8x128xf32> to vector<8x128xbf16>
    %cst_17 = arith.constant dense<0.000000e+00> : vector<8x128xf32>
    %35 = tpu.matmul %34, %32, %cst_17 {dimension_numbers = #tpu.dot_dimension_numbers<[1], [0], [0], [1], [0, 0, 1, 1], [], []>} : vector<8x128xbf16>, vector<128x128xbf16>, vector<8x128xf32> -> vector<8x128xf32>
    %36 = vector.broadcast %33 : vector<1x128xf32> to vector<8x128xf32>
    %37 = arith.addf %35, %36 : vector<8x128xf32>
    %cst_18 = arith.constant dense<0.000000e+00> : vector<8xf32>
    %38 = vector.multi_reduction <add>, %37, %cst_18 [1] : vector<8x128xf32> to vector<8xf32>
    %39 = vector.shape_cast %38 : vector<8xf32> to vector<8x1xf32>
    %40 = arith.mulf %37, %37 : vector<8x128xf32>
    %cst_19 = arith.constant dense<0.000000e+00> : vector<8xf32>
    %41 = vector.multi_reduction <add>, %40, %cst_19 [1] : vector<8x128xf32> to vector<8xf32>
    %42 = vector.shape_cast %41 : vector<8xf32> to vector<8x1xf32>
    %cst_20 = arith.constant 3.125000e-02 : f32
    %43 = vector.broadcast %cst_20 : f32 to vector<8x1xf32>
    %44 = arith.mulf %39, %43 : vector<8x1xf32>
    %cst_21 = arith.constant 3.125000e-02 : f32
    %45 = vector.broadcast %cst_21 : f32 to vector<8x1xf32>
    %46 = arith.mulf %42, %45 : vector<8x1xf32>
    %47 = arith.mulf %44, %44 : vector<8x1xf32>
    %48 = arith.subf %46, %47 : vector<8x1xf32>
    %cst_22 = arith.constant 0.000000e+00 : f32
    %49 = vector.broadcast %cst_22 : f32 to vector<8x1xf32>
    %50 = arith.maximumf %48, %49 : vector<8x1xf32>
    %51 = vector.broadcast %44 : vector<8x1xf32> to vector<8x128xf32>
    %52 = arith.subf %37, %51 : vector<8x128xf32>
    %cst_23 = arith.constant 9.99999974E-6 : f32
    %53 = vector.broadcast %cst_23 : f32 to vector<8x1xf32>
    %54 = arith.addf %50, %53 : vector<8x1xf32>
    %55 = math.rsqrt %54 : vector<8x1xf32>
    %56 = vector.broadcast %55 : vector<8x1xf32> to vector<8x128xf32>
    %57 = arith.mulf %52, %56 : vector<8x128xf32>
    %c1 = arith.constant 1 : index
    %58 = memref.load %arg1[%c1] : memref<2xf32, #tpu.memory_space<smem>>
    %cst_24 = arith.constant 0.000000e+00 : f32
    %59 = vector.broadcast %cst_24 : f32 to vector<8x128xf32>
    %60 = arith.cmpf ogt, %57, %59 : vector<8x128xf32>
    %61 = vector.broadcast %58 : f32 to vector<8x128xf32>
    %62 = arith.mulf %61, %57 : vector<8x128xf32>
    %63 = arith.select %60, %57, %62 : vector<8x128xi1>, vector<8x128xf32>
    %64 = arith.truncf %63 : vector<8x128xf32> to vector<8x128xbf16>
    %c0_25 = arith.constant 0 : index
    %c0_26 = arith.constant 0 : index
    %65 = vector.load %arg9[%c0_25, %c0_26] : memref<8x128xbf16, #tpu.memory_space<vmem>>, vector<8x128xbf16>
    tpu.vector_store %arg9[%c0_25, %c0_26], %64 {strides = array<i32>} : memref<8x128xbf16, #tpu.memory_space<vmem>>, vector<8x128xbf16>,
    %c0_27 = arith.constant 0 : index
    %c0_28 = arith.constant 0 : index
    %66 = vector.load %arg7[%c0_27, %c0_28] : memref<128x128xbf16, #tpu.memory_space<vmem>>, vector<128x128xbf16>
    %c0_29 = arith.constant 0 : index
    %c0_30 = arith.constant 0 : index
    %67 = vector.load %arg8[%c0_29, %c0_30] : memref<1x128xf32, #tpu.memory_space<vmem>>, vector<1x128xf32>
    %68 = arith.truncf %63 : vector<8x128xf32> to vector<8x128xbf16>
    %cst_31 = arith.constant dense<0.000000e+00> : vector<8x128xf32>
    %69 = tpu.matmul %68, %66, %cst_31 {dimension_numbers = #tpu.dot_dimension_numbers<[1], [0], [0], [1], [0, 0, 1, 1], [], []>} : vector<8x128xbf16>, vector<128x128xbf16>, vector<8x128xf32> -> vector<8x128xf32>
    %70 = vector.broadcast %67 : vector<1x128xf32> to vector<8x128xf32>
    %71 = arith.addf %69, %70 : vector<8x128xf32>
    %72 = arith.negf %71 : vector<8x128xf32>
    %73 = math.exp %72 : vector<8x128xf32>
    %cst_32 = arith.constant 1.000000e+00 : f32
    %74 = vector.broadcast %cst_32 : f32 to vector<8x128xf32>
    %75 = arith.addf %74, %73 : vector<8x128xf32>
    %76 = arith.divf %74, %75 : vector<8x128xf32>
    %77 = arith.truncf %76 : vector<8x128xf32> to vector<8x128xbf16>
    %c0_33 = arith.constant 0 : index
    %c0_34 = arith.constant 0 : index
    %78 = vector.load %arg10[%c0_33, %c0_34] : memref<8x128xbf16, #tpu.memory_space<vmem>>, vector<8x128xbf16>
    tpu.vector_store %arg10[%c0_33, %c0_34], %77 {strides = array<i32>} : memref<8x128xbf16, #tpu.memory_space<vmem>>, vector<8x128xbf16>,
    return
  }
  func.func @transform_0(%arg0: i32) -> i32 {
    %c0_i32 = arith.constant 0 : i32
    %c0_i32_0 = arith.constant 0 : i32
    return %c0_i32 : i32
  }
  func.func @transform_1(%arg0: i32) -> (i32, i32) {
    %c0_i32 = arith.constant 0 : i32
    %c0_i32_0 = arith.constant 0 : i32
    return %arg0, %c0_i32 : i32, i32
  }
  func.func @transform_2(%arg0: i32) -> (i32, i32) {
    %c0_i32 = arith.constant 0 : i32
    %c0_i32_0 = arith.constant 0 : i32
    %c0_i32_1 = arith.constant 0 : i32
    return %c0_i32, %c0_i32_0 : i32, i32
  }
  func.func @transform_3(%arg0: i32) -> (i32, i32) {
    %c0_i32 = arith.constant 0 : i32
    %c0_i32_0 = arith.constant 0 : i32
    %c0_i32_1 = arith.constant 0 : i32
    return %c0_i32, %c0_i32_0 : i32, i32
  }
  func.func @transform_4(%arg0: i32) -> (i32, i32) {
    %c0_i32 = arith.constant 0 : i32
    %c0_i32_0 = arith.constant 0 : i32
    %c0_i32_1 = arith.constant 0 : i32
    return %c0_i32, %c0_i32_0 : i32, i32
  }
  func.func @transform_5(%arg0: i32) -> (i32, i32) {
    %c0_i32 = arith.constant 0 : i32
    %c0_i32_0 = arith.constant 0 : i32
    %c0_i32_1 = arith.constant 0 : i32
    return %c0_i32, %c0_i32_0 : i32, i32
  }
  func.func @transform_6(%arg0: i32) -> (i32, i32) {
    %c0_i32 = arith.constant 0 : i32
    %c0_i32_0 = arith.constant 0 : i32
    %c0_i32_1 = arith.constant 0 : i32
    return %c0_i32, %c0_i32_0 : i32, i32
  }
  func.func @transform_7(%arg0: i32) -> (i32, i32) {
    %c0_i32 = arith.constant 0 : i32
    %c0_i32_0 = arith.constant 0 : i32
    %c0_i32_1 = arith.constant 0 : i32
    return %c0_i32, %c0_i32_0 : i32, i32
  }
  func.func @transform_8(%arg0: i32) -> (i32, i32) {
    %c0_i32 = arith.constant 0 : i32
    %c0_i32_0 = arith.constant 0 : i32
    return %arg0, %c0_i32 : i32, i32
  }
  func.func @transform_9(%arg0: i32) -> (i32, i32) {
    %c0_i32 = arith.constant 0 : i32
    %c0_i32_0 = arith.constant 0 : i32
    return %arg0, %c0_i32 : i32, i32
  }
}

module attributes {stable_mosaic.version = 11 : i64} {
  func.func @kernel(%arg0: i32, %arg1: memref<2xf32, #tpu.memory_space<smem>>, %arg2: memref<8x32xbf16, #tpu.memory_space<vmem>>, %arg3: memref<32x128xbf16, #tpu.memory_space<vmem>>, %arg4: memref<1x128xf32, #tpu.memory_space<vmem>>, %arg5: memref<128x128xbf16, #tpu.memory_space<vmem>>, %arg6: memref<1x128xf32, #tpu.memory_space<vmem>>, %arg7: memref<128x128xbf16, #tpu.memory_space<vmem>>, %arg8: memref<1x128xf32, #tpu.memory_space<vmem>>, %arg9: memref<8x128xbf16, #tpu.memory_space<vmem>>, %arg10: memref<8x128xbf16, #tpu.memory_space<vmem>>) attributes {dimension_semantics = [#tpu.dimension_semantics<parallel>], iteration_bounds = array<i64: 2>, scalar_prefetch = 0 : i64, scratch_operands = 0 : i64, tpu.core_type = #tpu.core_type<tc>, window_params = [{transform_indices = @transform_0, window_bounds = array<i64: 2>}, {transform_indices = @transform_1, window_bounds = array<i64: 8, 32>}, {pipeline_mode = #tpu.pipeline_mode<synchronous>, transform_indices = @transform_2, window_bounds = array<i64: 32, 128>}, {pipeline_mode = #tpu.pipeline_mode<synchronous>, transform_indices = @transform_3, window_bounds = array<i64: 1, 128>}, {pipeline_mode = #tpu.pipeline_mode<synchronous>, transform_indices = @transform_4, window_bounds = array<i64: 128, 128>}, {pipeline_mode = #tpu.pipeline_mode<synchronous>, transform_indices = @transform_5, window_bounds = array<i64: 1, 128>}, {pipeline_mode = #tpu.pipeline_mode<synchronous>, transform_indices = @transform_6, window_bounds = array<i64: 128, 128>}, {pipeline_mode = #tpu.pipeline_mode<synchronous>, transform_indices = @transform_7, window_bounds = array<i64: 1, 128>}, {transform_indices = @transform_8, window_bounds = array<i64: 8, 128>}, {transform_indices = @transform_9, window_bounds = array<i64: 8, 128>}]} {
    %c0 = arith.constant 0 : index
    %c0_0 = arith.constant 0 : index
    %0 = vector.load %arg2[%c0, %c0_0] : memref<8x32xbf16, #tpu.memory_space<vmem>>, vector<8x32xbf16>
    %c0_1 = arith.constant 0 : index
    %c0_2 = arith.constant 0 : index
    %1 = vector.load %arg3[%c0_1, %c0_2] : memref<32x128xbf16, #tpu.memory_space<vmem>>, vector<32x128xbf16>
    %c0_3 = arith.constant 0 : index
    %c0_4 = arith.constant 0 : index
    %2 = vector.load %arg4[%c0_3, %c0_4] : memref<1x128xf32, #tpu.memory_space<vmem>>, vector<1x128xf32>
    %cst = arith.constant dense<0.000000e+00> : vector<8x128xf32>
    %3 = tpu.matmul %0, %1, %cst {dimension_numbers = #tpu.dot_dimension_numbers<[1], [0], [0], [1], [0, 0, 1, 1], [], []>} : vector<8x32xbf16>, vector<32x128xbf16>, vector<8x128xf32> -> vector<8x128xf32>
    %4 = vector.broadcast %2 : vector<1x128xf32> to vector<8x128xf32>
    %5 = arith.addf %3, %4 : vector<8x128xf32>
    %cst_5 = arith.constant dense<0.000000e+00> : vector<8xf32>
    %6 = vector.multi_reduction <add>, %5, %cst_5 [1] : vector<8x128xf32> to vector<8xf32>
    %7 = vector.shape_cast %6 : vector<8xf32> to vector<8x1xf32>
    %8 = arith.mulf %5, %5 : vector<8x128xf32>
    %cst_6 = arith.constant dense<0.000000e+00> : vector<8xf32>
    %9 = vector.multi_reduction <add>, %8, %cst_6 [1] : vector<8x128xf32> to vector<8xf32>
    %10 = vector.shape_cast %9 : vector<8xf32> to vector<8x1xf32>
    %cst_7 = arith.constant 1.562500e-02 : f32
    %11 = vector.broadcast %cst_7 : f32 to vector<8x1xf32>
    %12 = arith.mulf %7, %11 : vector<8x1xf32>
    %cst_8 = arith.constant 1.562500e-02 : f32
    %13 = vector.broadcast %cst_8 : f32 to vector<8x1xf32>
    %14 = arith.mulf %10, %13 : vector<8x1xf32>
    %15 = arith.mulf %12, %12 : vector<8x1xf32>
    %16 = arith.subf %14, %15 : vector<8x1xf32>
    %cst_9 = arith.constant 0.000000e+00 : f32
    %17 = vector.broadcast %cst_9 : f32 to vector<8x1xf32>
    %18 = arith.maximumf %16, %17 : vector<8x1xf32>
    %19 = vector.broadcast %12 : vector<8x1xf32> to vector<8x128xf32>
    %20 = arith.subf %5, %19 : vector<8x128xf32>
    %cst_10 = arith.constant 9.99999974E-6 : f32
    %21 = vector.broadcast %cst_10 : f32 to vector<8x1xf32>
    %22 = arith.addf %18, %21 : vector<8x1xf32>
    %23 = math.rsqrt %22 : vector<8x1xf32>
    %24 = vector.broadcast %23 : vector<8x1xf32> to vector<8x128xf32>
    %25 = arith.mulf %20, %24 : vector<8x128xf32>
    %c0_11 = arith.constant 0 : index
    %26 = memref.load %arg1[%c0_11] : memref<2xf32, #tpu.memory_space<smem>>
    %cst_12 = arith.constant 0.000000e+00 : f32
    %27 = vector.broadcast %cst_12 : f32 to vector<8x128xf32>
    %28 = arith.cmpf ogt, %25, %27 : vector<8x128xf32>
    %29 = vector.broadcast %26 : f32 to vector<8x128xf32>
    %30 = arith.mulf %29, %25 : vector<8x128xf32>
    %31 = arith.select %28, %25, %30 : vector<8x128xi1>, vector<8x128xf32>
    %c0_13 = arith.constant 0 : index
    %c0_14 = arith.constant 0 : index
    %32 = vector.load %arg5[%c0_13, %c0_14] : memref<128x128xbf16, #tpu.memory_space<vmem>>, vector<128x128xbf16>
    %c0_15 = arith.constant 0 : index
    %c0_16 = arith.constant 0 : index
    %33 = vector.load %arg6[%c0_15, %c0_16] : memref<1x128xf32, #tpu.memory_space<vmem>>, vector<1x128xf32>
    %34 = arith.truncf %31 : vector<8x128xf32> to vector<8x128xbf16>
    %cst_17 = arith.constant dense<0.000000e+00> : vector<8x128xf32>
    %35 = tpu.matmul %34, %32, %cst_17 {dimension_numbers = #tpu.dot_dimension_numbers<[1], [0], [0], [1], [0, 0, 1, 1], [], []>} : vector<8x128xbf16>, vector<128x128xbf16>, vector<8x128xf32> -> vector<8x128xf32>
    %36 = vector.broadcast %33 : vector<1x128xf32> to vector<8x128xf32>
    %37 = arith.addf %35, %36 : vector<8x128xf32>
    %cst_18 = arith.constant dense<0.000000e+00> : vector<8xf32>
    %38 = vector.multi_reduction <add>, %37, %cst_18 [1] : vector<8x128xf32> to vector<8xf32>
    %39 = vector.shape_cast %38 : vector<8xf32> to vector<8x1xf32>
    %40 = arith.mulf %37, %37 : vector<8x128xf32>
    %cst_19 = arith.constant dense<0.000000e+00> : vector<8xf32>
    %41 = vector.multi_reduction <add>, %40, %cst_19 [1] : vector<8x128xf32> to vector<8xf32>
    %42 = vector.shape_cast %41 : vector<8xf32> to vector<8x1xf32>
    %cst_20 = arith.constant 3.125000e-02 : f32
    %43 = vector.broadcast %cst_20 : f32 to vector<8x1xf32>
    %44 = arith.mulf %39, %43 : vector<8x1xf32>
    %cst_21 = arith.constant 3.125000e-02 : f32
    %45 = vector.broadcast %cst_21 : f32 to vector<8x1xf32>
    %46 = arith.mulf %42, %45 : vector<8x1xf32>
    %47 = arith.mulf %44, %44 : vector<8x1xf32>
    %48 = arith.subf %46, %47 : vector<8x1xf32>
    %cst_22 = arith.constant 0.000000e+00 : f32
    %49 = vector.broadcast %cst_22 : f32 to vector<8x1xf32>
    %50 = arith.maximumf %48, %49 : vector<8x1xf32>
    %51 = vector.broadcast %44 : vector<8x1xf32> to vector<8x128xf32>
    %52 = arith.subf %37, %51 : vector<8x128xf32>
    %cst_23 = arith.constant 9.99999974E-6 : f32
    %53 = vector.broadcast %cst_23 : f32 to vector<8x1xf32>
    %54 = arith.addf %50, %53 : vector<8x1xf32>
    %55 = math.rsqrt %54 : vector<8x1xf32>
    %56 = vector.broadcast %55 : vector<8x1xf32> to vector<8x128xf32>
    %57 = arith.mulf %52, %56 : vector<8x128xf32>
    %c1 = arith.constant 1 : index
    %58 = memref.load %arg1[%c1] : memref<2xf32, #tpu.memory_space<smem>>
    %cst_24 = arith.constant 0.000000e+00 : f32
    %59 = vector.broadcast %cst_24 : f32 to vector<8x128xf32>
    %60 = arith.cmpf ogt, %57, %59 : vector<8x128xf32>
    %61 = vector.broadcast %58 : f32 to vector<8x128xf32>
    %62 = arith.mulf %61, %57 : vector<8x128xf32>
    %63 = arith.select %60, %57, %62 : vector<8x128xi1>, vector<8x128xf32>
    %64 = arith.truncf %63 : vector<8x128xf32> to vector<8x128xbf16>
    %c0_25 = arith.constant 0 : index
    %c0_26 = arith.constant 0 : index
    %65 = vector.load %arg9[%c0_25, %c0_26] : memref<8x128xbf16, #tpu.memory_space<vmem>>, vector<8x128xbf16>
    tpu.vector_store %arg9[%c0_25, %c0_26], %64 {strides = array<i32>} : memref<8x128xbf16, #tpu.memory_space<vmem>>, vector<8x128xbf16>,
    %c0_27 = arith.constant 0 : index
    %c0_28 = arith.constant 0 : index
    %66 = vector.load %arg7[%c0_27, %c0_28] : memref<128x128xbf16, #tpu.memory_space<vmem>>, vector<128x128xbf16>
    %c0_29 = arith.constant 0 : index
    %c0_30 = arith.constant 0 : index
    %67 = vector.load %arg8[%c0_29, %c0_30] : memref<1x128xf32, #tpu.memory_space<vmem>>, vector<1x128xf32>
    %68 = arith.truncf %63 : vector<8x128xf32> to vector<8x128xbf16>
    %cst_31 = arith.constant dense<0.000000e+00> : vector<8x128xf32>
    %69 = tpu.matmul %68, %66, %cst_31 {dimension_numbers = #tpu.dot_dimension_numbers<[1], [0], [0], [1], [0, 0, 1, 1], [], []>} : vector<8x128xbf16>, vector<128x128xbf16>, vector<8x128xf32> -> vector<8x128xf32>
    %70 = vector.broadcast %67 : vector<1x128xf32> to vector<8x128xf32>
    %71 = arith.addf %69, %70 : vector<8x128xf32>
    %72 = arith.negf %71 : vector<8x128xf32>
    %73 = math.exp %72 : vector<8x128xf32>
    %cst_32 = arith.constant 1.000000e+00 : f32
    %74 = vector.broadcast %cst_32 : f32 to vector<8x128xf32>
    %75 = arith.addf %74, %73 : vector<8x128xf32>
    %76 = arith.divf %74, %75 : vector<8x128xf32>
    %77 = arith.truncf %76 : vector<8x128xf32> to vector<8x128xbf16>
    %c0_33 = arith.constant 0 : index
    %c0_34 = arith.constant 0 : index
    %78 = vector.load %arg10[%c0_33, %c0_34] : memref<8x128xbf16, #tpu.memory_space<vmem>>, vector<8x128xbf16>
    tpu.vector_store %arg10[%c0_33, %c0_34], %77 {strides = array<i32>} : memref<8x128xbf16, #tpu.memory_space<vmem>>, vector<8x128xbf16>,
    return
  }
  func.func @transform_0(%arg0: i32) -> i32 {
    %c0_i32 = arith.constant 0 : i32
    %c0_i32_0 = arith.constant 0 : i32
    return %c0_i32 : i32
  }
  func.func @transform_1(%arg0: i32) -> (i32, i32) {
    %c0_i32 = arith.constant 0 : i32
    %c0_i32_0 = arith.constant 0 : i32
    return %arg0, %c0_i32 : i32, i32
  }
  func.func @transform_2(%arg0: i32) -> (i32, i32) {
    %c0_i32 = arith.constant 0 : i32
    %c0_i32_0 = arith.constant 0 : i32
    %c0_i32_1 = arith.constant 0 : i32
    return %c0_i32, %c0_i32_0 : i32, i32
  }
  func.func @transform_3(%arg0: i32) -> (i32, i32) {
    %c0_i32 = arith.constant 0 : i32
    %c0_i32_0 = arith.constant 0 : i32
    %c0_i32_1 = arith.constant 0 : i32
    return %c0_i32, %c0_i32_0 : i32, i32
  }
  func.func @transform_4(%arg0: i32) -> (i32, i32) {
    %c0_i32 = arith.constant 0 : i32
    %c0_i32_0 = arith.constant 0 : i32
    %c0_i32_1 = arith.constant 0 : i32
    return %c0_i32, %c0_i32_0 : i32, i32
  }
  func.func @transform_5(%arg0: i32) -> (i32, i32) {
    %c0_i32 = arith.constant 0 : i32
    %c0_i32_0 = arith.constant 0 : i32
    %c0_i32_1 = arith.constant 0 : i32
    return %c0_i32, %c0_i32_0 : i32, i32
  }
  func.func @transform_6(%arg0: i32) -> (i32, i32) {
    %c0_i32 = arith.constant 0 : i32
    %c0_i32_0 = arith.constant 0 : i32
    %c0_i32_1 = arith.constant 0 : i32
    return %c0_i32, %c0_i32_0 : i32, i32
  }
  func.func @transform_7(%arg0: i32) -> (i32, i32) {
    %c0_i32 = arith.constant 0 : i32
    %c0_i32_0 = arith.constant 0 : i32
    %c0_i32_1 = arith.constant 0 : i32
    return %c0_i32, %c0_i32_0 : i32, i32
  }
  func.func @transform_8(%arg0: i32) -> (i32, i32) {
    %c0_i32 = arith.constant 0 : i32
    %c0_i32_0 = arith.constant 0 : i32
    return %arg0, %c0_i32 : i32, i32
  }
  func.func @transform_9(%arg0: i32) -> (i32, i32) {
    %c0_i32 = arith.constant 0 : i32
    %c0_i32_0 = arith.constant 0 : i32
    return %arg0, %c0_i32 : i32, i32
  }
}

</mosaic_0001>

<llo_original>
// kernel: tpu_custom_call.1
$region0: #{tpu_custom_call.1}
  #allocation0 [shape = 'u32[]', space=smem, size = 0x4, offset = 0x4, fixed_abs, tag = 'smem constant byte address 0x4 - core index']
  #allocation1 [shape = 'u32[72,128]{1,0:T(1,128)}', space=vmem, size = 0x9000, scoped, tag = 'internal scratch']
  %s0 = inlined_call_operand.hbm [shape: f32[2], index: 0, kind: input, shape index: {}]
  %s1 = inlined_call_operand.hbm [shape: bf16[16,32], index: 1, kind: input, shape index: {}]
  %s2 = inlined_call_operand.hbm [shape: bf16[32,128], index: 2, kind: input, shape index: {}]
  %s3 = inlined_call_operand.vmem [shape: f32[1,128], index: 3, kind: input, shape index: {}]
  %s4 = inlined_call_operand.hbm [shape: bf16[128,128], index: 4, kind: input, shape index: {}]
  %s5 = inlined_call_operand.vmem [shape: f32[1,128], index: 5, kind: input, shape index: {}]
  %s6 = inlined_call_operand.hbm [shape: bf16[128,128], index: 6, kind: input, shape index: {}]
  %s7 = inlined_call_operand.vmem [shape: f32[1,128], index: 7, kind: input, shape index: {}]
  %s8 = inlined_call_operand.hbm [shape: bf16[16,128], index: 8, kind: output, shape index: {0}]
  %s9 = inlined_call_operand.hbm [shape: bf16[16,128], index: 9, kind: output, shape index: {1}]
  %10 = xla_tuple %s8, %s9
  %s11 = sld [smem:[#allocation0]]
  $region93: #{tpu_custom_call.1} parent=0
    _
  %s13 = ssub.s32 1, %s11
  %s14 = scalar_select 0, %s13, %s11
  $region1: #{tpu_custom_call.1} parent=0
    #allocation2 [shape = 'u8[512]{0}', space=smem, size = 0x200, scoped, tag = 'input window, operand 0, single buffered']
    #allocation3 [shape = 's32[2]{0}', space=sflag, size = 0x8, scoped, tag = 'scoped memory for tpu_custom_call.1']
    #allocation4 [shape = 's32[2]{0}', space=sflag, size = 0x8, scoped, tag = 'scoped memory for tpu_custom_call.1']
    #allocation5 [shape = 's32[2]{0}', space=sflag, size = 0x8, scoped, tag = 'scoped memory for tpu_custom_call.1']
    #allocation6 [shape = 'u8[4096]{0}', space=vmem, size = 0x1000, scoped, tag = 'input window, operand 1']
    #allocation7 [shape = 'u8[8192]{0}', space=vmem, size = 0x2000, scoped, tag = 'input window, operand 2, single buffered']
    #allocation8 [shape = 's32[1]{0}', space=sflag, size = 0x4, scoped, tag = 'scoped memory for tpu_custom_call.1']
    #allocation9 [shape = 'u8[32768]{0}', space=vmem, size = 0x8000, scoped, tag = 'input window, operand 4, single buffered']
    #allocation10 [shape = 'u8[32768]{0}', space=vmem, size = 0x8000, scoped, tag = 'input window, operand 6, single buffered']
    #allocation11 [shape = 's32[1]{0}', space=sflag, size = 0x4, scoped, tag = 'scoped memory for tpu_custom_call.1']
    #allocation12 [shape = 'u8[4096]{0}', space=vmem, size = 0x1000, scoped, tag = 'output window, operand 0']
    #allocation13 [shape = 'u8[4096]{0}', space=vmem, size = 0x1000, scoped, tag = 'output window, operand 1']
    #allocation14 [shape = 's32[2]{0}', space=sflag, size = 0x8, scoped, tag = 'scoped memory for tpu_custom_call.1']
    %15 = vsyncpa [#allocation5], 0
    %16 = vsyncpa [#allocation3], 0
    %s17 = scalar_lea.sflag [#allocation3], 1
    %18 = vsyncpa %s17, 0
    %19 = vsyncpa [#allocation8], 0
    %20 = vsyncpa [#allocation11], 0
    %21 = vsyncpa [#allocation4], 0
    %s22 = scalar_lea.sflag [#allocation4], 1
    %23 = vsyncpa %s22, 0
    %24 = vsyncpa [#allocation14], 0
    %s25 = scalar_lea.sflag [#allocation14], 1
    %26 = vsyncpa %s25, 0
    loop: start=0, step=1, limit=4
    $region2: #{tpu_custom_call.1} parent=1 // loop_pre_header
      _
    $region3: #{tpu_custom_call.1} parent=1 // loop_header
      %s28 = sphi 0, %s32
      %p29 = scmp.ge.s32.totalorder %s28, 4
      %s36 = sphi 0, %s36
      %s38 = sphi 0, %s36
      %s39 = sphi 0, %s38
      %s53 = sphi 0, %s39
      %s59 = sphi 0, %s61
      %s62 = sphi 0, %s59
      %s63 = sphi 0, %s62
      %s79 = sphi 0, %s63
      %s83 = sphi 0, %s83
      %s85 = sphi 0, %s83
      %s86 = sphi 0, %s85
      %s100 = sphi 0, %s86
      %s104 = sphi 0, %s104
      %s106 = sphi 0, %s104
      %s107 = sphi 0, %s106
      %s121 = sphi 0, %s107
      %s125 = sphi 0, %s125
      %s127 = sphi 0, %s125
      %s128 = sphi 0, %s127
      %s142 = sphi 0, %s128
      %s146 = sphi 0, %s146
      %s148 = sphi 0, %s146
      %s149 = sphi 0, %s148
      %s163 = sphi 0, %s149
      %s167 = sphi 0, %s167
      %s169 = sphi 0, %s167
      %s170 = sphi 0, %s169
      %s184 = sphi 0, %s170
      %s188 = sphi 0, %s188
      %s190 = sphi 0, %s188
      %s191 = sphi 0, %s190
      %s205 = sphi 0, %s191
      %s211 = sphi 0, %s213
      %s214 = sphi 0, %s211
      %s215 = sphi 0, %s214
      %s231 = sphi 0, %s215
      %s237 = sphi 0, %s239
      %s240 = sphi 0, %s237
      %s241 = sphi 0, %s240
      %s257 = sphi 0, %s241
    $region4: #{tpu_custom_call.1} parent=1 // loop_header_branch
      %31 = sbr.rel (%p29) target = $region8
    $region5: #{tpu_custom_call.1} parent=1 // loop_body
      %s33 = ssub.s32 %s28, 1
      %s34 = ssub.s32 %s28, 2
      %s35 = sadd.s32 %s28, 1
      %s37 = sadd.s32 %s36, 1
      %p40 = scmp.eq.s32.totalorder %s28, 1
      %p41 = scmp.ne.s32.totalorder %s36, %s38
      %p42 = scmp.eq.s32.totalorder %s28, 0
      %p43 = por %p41, %p42
      %p44 = scmp.ne.s32.totalorder %s36, %s38
      %p45 = scmp.eq.s32.totalorder %s33, 1
      %p46 = por %p44, %p45
      %p47 = scmp.ne.s32.totalorder %s38, %s39
      %p48 = scmp.eq.s32.totalorder %s33, 0
      %p49 = por %p47, %p48
      %p50 = scmp.ne.s32.totalorder %s38, %s39
      %p51 = scmp.eq.s32.totalorder %s34, 1
      %p52 = por %p50, %p51
      %p54 = scmp.ne.s32.totalorder %s39, %s53
      %p55 = scmp.eq.s32.totalorder %s34, 0
      %p56 = por %p54, %p55
      %s57 = ssub.s32 %s28, %s35
      %p58 = scmp.eq.s32.totalorder %s57, 0
      %s60 = sadd.s32 %s59, 1
      %s61 = scalar_select %p58, %s59, %s60
      %p64 = pneg %p58
      %p65 = scmp.eq.s32.totalorder %s28, 1
      %p66 = por %p64, %p65
      %p67 = scmp.ne.s32.totalorder %s59, %s62
      %p68 = scmp.eq.s32.totalorder %s28, 0
      %p69 = por %p67, %p68
      %p70 = scmp.ne.s32.totalorder %s59, %s62
      %p71 = scmp.eq.s32.totalorder %s33, 1
      %p72 = por %p70, %p71
      %p73 = scmp.ne.s32.totalorder %s62, %s63
      %p74 = scmp.eq.s32.totalorder %s33, 0
      %p75 = por %p73, %p74
      %p76 = scmp.ne.s32.totalorder %s62, %s63
      %p77 = scmp.eq.s32.totalorder %s34, 1
      %p78 = por %p76, %p77
      %p80 = scmp.ne.s32.totalorder %s63, %s79
      %p81 = scmp.eq.s32.totalorder %s34, 0
      %p82 = por %p80, %p81
      %s84 = sadd.s32 %s83, 1
      %p87 = scmp.eq.s32.totalorder %s28, 1
      %p88 = scmp.ne.s32.totalorder %s83, %s85
      %p89 = scmp.eq.s32.totalorder %s28, 0
      %p90 = por %p88, %p89
      %p91 = scmp.ne.s32.totalorder %s83, %s85
      %p92 = scmp.eq.s32.totalorder %s33, 1
      %p93 = por %p91, %p92
      %p94 = scmp.ne.s32.totalorder %s85, %s86
      %p95 = scmp.eq.s32.totalorder %s33, 0
      %p96 = por %p94, %p95
      %p97 = scmp.ne.s32.totalorder %s85, %s86
      %p98 = scmp.eq.s32.totalorder %s34, 1
      %p99 = por %p97, %p98
      %p101 = scmp.ne.s32.totalorder %s86, %s100
      %p102 = scmp.eq.s32.totalorder %s34, 0
      %p103 = por %p101, %p102
      %s105 = sadd.s32 %s104, 1
      %p108 = scmp.eq.s32.totalorder %s28, 1
      %p109 = scmp.ne.s32.totalorder %s104, %s106
      %p110 = scmp.eq.s32.totalorder %s28, 0
      %p111 = por %p109, %p110
      %p112 = scmp.ne.s32.totalorder %s104, %s106
      %p113 = scmp.eq.s32.totalorder %s33, 1
      %p114 = por %p112, %p113
      %p115 = scmp.ne.s32.totalorder %s106, %s107
      %p116 = scmp.eq.s32.totalorder %s33, 0
      %p117 = por %p115, %p116
      %p118 = scmp.ne.s32.totalorder %s106, %s107
      %p119 = scmp.eq.s32.totalorder %s34, 1
      %p120 = por %p118, %p119
      %p122 = scmp.ne.s32.totalorder %s107, %s121
      %p123 = scmp.eq.s32.totalorder %s34, 0
      %p124 = por %p122, %p123
      %s126 = sadd.s32 %s125, 1
      %p129 = scmp.eq.s32.totalorder %s28, 1
      %p130 = scmp.ne.s32.totalorder %s125, %s127
      %p131 = scmp.eq.s32.totalorder %s28, 0
      %p132 = por %p130, %p131
      %p133 = scmp.ne.s32.totalorder %s125, %s127
      %p134 = scmp.eq.s32.totalorder %s33, 1
      %p135 = por %p133, %p134
      %p136 = scmp.ne.s32.totalorder %s127, %s128
      %p137 = scmp.eq.s32.totalorder %s33, 0
      %p138 = por %p136, %p137
      %p139 = scmp.ne.s32.totalorder %s127, %s128
      %p140 = scmp.eq.s32.totalorder %s34, 1
      %p141 = por %p139, %p140
      %p143 = scmp.ne.s32.totalorder %s128, %s142
      %p144 = scmp.eq.s32.totalorder %s34, 0
      %p145 = por %p143, %p144
      %s147 = sadd.s32 %s146, 1
      %p150 = scmp.eq.s32.totalorder %s28, 1
      %p151 = scmp.ne.s32.totalorder %s146, %s148
      %p152 = scmp.eq.s32.totalorder %s28, 0
      %p153 = por %p151, %p152
      %p154 = scmp.ne.s32.totalorder %s146, %s148
      %p155 = scmp.eq.s32.totalorder %s33, 1
      %p156 = por %p154, %p155
      %p157 = scmp.ne.s32.totalorder %s148, %s149
      %p158 = scmp.eq.s32.totalorder %s33, 0
      %p159 = por %p157, %p158
      %p160 = scmp.ne.s32.totalorder %s148, %s149
      %p161 = scmp.eq.s32.totalorder %s34, 1
      %p162 = por %p160, %p161
      %p164 = scmp.ne.s32.totalorder %s149, %s163
      %p165 = scmp.eq.s32.totalorder %s34, 0
      %p166 = por %p164, %p165
      %s168 = sadd.s32 %s167, 1
      %p171 = scmp.eq.s32.totalorder %s28, 1
      %p172 = scmp.ne.s32.totalorder %s167, %s169
      %p173 = scmp.eq.s32.totalorder %s28, 0
      %p174 = por %p172, %p173
      %p175 = scmp.ne.s32.totalorder %s167, %s169
      %p176 = scmp.eq.s32.totalorder %s33, 1
      %p177 = por %p175, %p176
      %p178 = scmp.ne.s32.totalorder %s169, %s170
      %p179 = scmp.eq.s32.totalorder %s33, 0
      %p180 = por %p178, %p179
      %p181 = scmp.ne.s32.totalorder %s169, %s170
      %p182 = scmp.eq.s32.totalorder %s34, 1
      %p183 = por %p181, %p182
      %p185 = scmp.ne.s32.totalorder %s170, %s184
      %p186 = scmp.eq.s32.totalorder %s34, 0
      %p187 = por %p185, %p186
      %s189 = sadd.s32 %s188, 1
      %p192 = scmp.eq.s32.totalorder %s28, 1
      %p193 = scmp.ne.s32.totalorder %s188, %s190
      %p194 = scmp.eq.s32.totalorder %s28, 0
      %p195 = por %p193, %p194
      %p196 = scmp.ne.s32.totalorder %s188, %s190
      %p197 = scmp.eq.s32.totalorder %s33, 1
      %p198 = por %p196, %p197
      %p199 = scmp.ne.s32.totalorder %s190, %s191
      %p200 = scmp.eq.s32.totalorder %s33, 0
      %p201 = por %p199, %p200
      %p202 = scmp.ne.s32.totalorder %s190, %s191
      %p203 = scmp.eq.s32.totalorder %s34, 1
      %p204 = por %p202, %p203
      %p206 = scmp.ne.s32.totalorder %s191, %s205
      %p207 = scmp.eq.s32.totalorder %s34, 0
      %p208 = por %p206, %p207
      %s209 = ssub.s32 %s28, %s35
      %p210 = scmp.eq.s32.totalorder %s209, 0
      %s212 = sadd.s32 %s211, 1
      %s213 = scalar_select %p210, %s211, %s212
      %p216 = pneg %p210
      %p217 = scmp.eq.s32.totalorder %s28, 1
      %p218 = por %p216, %p217
      %p219 = scmp.ne.s32.totalorder %s211, %s214
      %p220 = scmp.eq.s32.totalorder %s28, 0
      %p221 = por %p219, %p220
      %p222 = scmp.ne.s32.totalorder %s211, %s214
      %p223 = scmp.eq.s32.totalorder %s33, 1
      %p224 = por %p222, %p223
      %p225 = scmp.ne.s32.totalorder %s214, %s215
      %p226 = scmp.eq.s32.totalorder %s33, 0
      %p227 = por %p225, %p226
      %p228 = scmp.ne.s32.totalorder %s214, %s215
      %p229 = scmp.eq.s32.totalorder %s34, 1
      %p230 = por %p228, %p229
      %p232 = scmp.ne.s32.totalorder %s215, %s231
      %p233 = scmp.eq.s32.totalorder %s34, 0
      %p234 = por %p232, %p233
      %s235 = ssub.s32 %s28, %s35
      %p236 = scmp.eq.s32.totalorder %s235, 0
      %s238 = sadd.s32 %s237, 1
      %s239 = scalar_select %p236, %s237, %s238
      %p242 = pneg %p236
      %p243 = scmp.eq.s32.totalorder %s28, 1
      %p244 = por %p242, %p243
      %p245 = scmp.ne.s32.totalorder %s237, %s240
      %p246 = scmp.eq.s32.totalorder %s28, 0
      %p247 = por %p245, %p246
      %p248 = scmp.ne.s32.totalorder %s237, %s240
      %p249 = scmp.eq.s32.totalorder %s33, 1
      %p250 = por %p248, %p249
      %p251 = scmp.ne.s32.totalorder %s240, %s241
      %p252 = scmp.eq.s32.totalorder %s33, 0
      %p253 = por %p251, %p252
      %p254 = scmp.ne.s32.totalorder %s240, %s241
      %p255 = scmp.eq.s32.totalorder %s34, 1
      %p256 = por %p254, %p255
      %p258 = scmp.ne.s32.totalorder %s241, %s257
      %p259 = scmp.eq.s32.totalorder %s34, 0
      %p260 = por %p258, %p259
      %p261 = scmp.le.s32.totalorder 1, %s28
      %p262 = scmp.lt.s32.totalorder %s28, 3
      %p263 = pnand %p261, %p262
      %p264 = pneg %p263
      // Predicated region
      $region9: #{tpu_custom_call.1} parent=5 // pred_check
        _
      $region10: #{tpu_custom_call.1} parent=5 // pred_check_branch
        %266 = sbr.rel (%p263) target = $region12
      $region11: #{tpu_custom_call.1} parent=5 // pred_region
        %s267 = ssub.s32 %s28, 1
        // Predicated region
        $region13: #{tpu_custom_call.1} parent=11 // pred_check
          %p268 = pneg %p49
        $region14: #{tpu_custom_call.1} parent=11 // pred_check_branch
          %270 = sbr.rel (%p268) target = $region16
        $region15: #{tpu_custom_call.1} parent=11 // pred_region
          %272 = vsyncadd [#allocation5], 0
          %s274 = sshll.u32 %s0, 4
          %s275 = int_to_ptr.hbm [resolvable:$true] %s274
          %277 = dma.hbm_to_smem %s275, 16, [#allocation2], [#allocation5]
        $region16: #{tpu_custom_call.1} parent=11 // pred_fallthru
          _
        // Predicated region
        $region17: #{tpu_custom_call.1} parent=11 // pred_check
          %p278 = pneg %p96
        $region18: #{tpu_custom_call.1} parent=11 // pred_check_branch
          %280 = sbr.rel (%p278) target = $region20
        $region19: #{tpu_custom_call.1} parent=11 // pred_region
          %282 = vsyncadd [#allocation8], 0
          %s283 = sshll.u32 %s2, 4
          %s284 = int_to_ptr.hbm [resolvable:$true] %s283
          %s285 = sshll.u32 [#allocation7], 4
          %s286 = int_to_ptr.vmem [resolvable:$true] %s285
          %291 = dma.hbm_to_vmem [thread:$0]  %s284, 256, %s286, [#allocation8], 64, 64, 4
        $region20: #{tpu_custom_call.1} parent=11 // pred_fallthru
          _
        // Predicated region
        $region21: #{tpu_custom_call.1} parent=11 // pred_check
          %p292 = pneg %p117
        $region22: #{tpu_custom_call.1} parent=11 // pred_check_branch
          %294 = sbr.rel (%p292) target = $region24
        $region23: #{tpu_custom_call.1} parent=11 // pred_region
          _
        $region24: #{tpu_custom_call.1} parent=11 // pred_fallthru
          _
        // Predicated region
        $region25: #{tpu_custom_call.1} parent=11 // pred_check
          %p295 = pneg %p138
        $region26: #{tpu_custom_call.1} parent=11 // pred_check_branch
          %297 = sbr.rel (%p295) target = $region28
        $region27: #{tpu_custom_call.1} parent=11 // pred_region
          %299 = vsyncadd [#allocation8], 0
          %s300 = sshll.u32 %s4, 4
          %s301 = int_to_ptr.hbm [resolvable:$true] %s300
          %s302 = sshll.u32 [#allocation9], 4
          %s303 = int_to_ptr.vmem [resolvable:$true] %s302
          %308 = dma.hbm_to_vmem [thread:$0]  %s301, 1024, %s303, [#allocation8], 64, 64, 4
        $region28: #{tpu_custom_call.1} parent=11 // pred_fallthru
          _
        // Predicated region
        $region29: #{tpu_custom_call.1} parent=11 // pred_check
          %p309 = pneg %p159
        $region30: #{tpu_custom_call.1} parent=11 // pred_check_branch
          %311 = sbr.rel (%p309) target = $region32
        $region31: #{tpu_custom_call.1} parent=11 // pred_region
          _
        $region32: #{tpu_custom_call.1} parent=11 // pred_fallthru
          _
        // Predicated region
        $region33: #{tpu_custom_call.1} parent=11 // pred_check
          %p312 = pneg %p180
        $region34: #{tpu_custom_call.1} parent=11 // pred_check_branch
          %314 = sbr.rel (%p312) target = $region36
        $region35: #{tpu_custom_call.1} parent=11 // pred_region
          %316 = vsyncadd [#allocation11], 0
          %s317 = sshll.u32 %s6, 4
          %s318 = int_to_ptr.hbm [resolvable:$true] %s317
          %s319 = sshll.u32 [#allocation10], 4
          %s320 = int_to_ptr.vmem [resolvable:$true] %s319
          %325 = dma.hbm_to_vmem [thread:$0]  %s318, 1024, %s320, [#allocation11], 64, 64, 4
        $region36: #{tpu_custom_call.1} parent=11 // pred_fallthru
          _
        // Predicated region
        $region37: #{tpu_custom_call.1} parent=11 // pred_check
          %p326 = pneg %p201
        $region38: #{tpu_custom_call.1} parent=11 // pred_check_branch
          %328 = sbr.rel (%p326) target = $region40
        $region39: #{tpu_custom_call.1} parent=11 // pred_region
          _
        $region40: #{tpu_custom_call.1} parent=11 // pred_fallthru
          _
      $region12: #{tpu_custom_call.1} parent=5 // pred_fallthru
        _
      %p329 = scmp.lt.s32.totalorder %s28, 2
      // Predicated region
      $region41: #{tpu_custom_call.1} parent=5 // pred_check
        %p330 = pneg %p329
      $region42: #{tpu_custom_call.1} parent=5 // pred_check_branch
        %332 = sbr.rel (%p330) target = $region44
      $region43: #{tpu_custom_call.1} parent=5 // pred_region
        // Predicated region
        $region45: #{tpu_custom_call.1} parent=43 // pred_check
          %p333 = pneg %p69
        $region46: #{tpu_custom_call.1} parent=43 // pred_check_branch
          %335 = sbr.rel (%p333) target = $region48
        $region47: #{tpu_custom_call.1} parent=43 // pred_region
          %s336 = sand.u32 %s59, 1
          %s337 = scalar_lea.sflag [#allocation3], %s336
          %s338 = sand.u32 %s59, 1
          %s339 = smul.addr %s338, 4
          %s340 = scalar_lea.vmem [#allocation6], %s339
          %342 = vsyncadd %s337, 0
          %s343 = smul.addr %s28, 4
          %s344 = scalar_lea.hbm %s1, %s343
          %s346 = sshll.u32 %s344, 4
          %s347 = int_to_ptr.hbm [resolvable:$true] %s346
          %s348 = sshll.u32 %s340, 4
          %s349 = int_to_ptr.vmem [resolvable:$true] %s348
          %351 = dma.hbm_to_vmem [thread:$0]  %s347, 64, %s349, %s337
        $region48: #{tpu_custom_call.1} parent=43 // pred_fallthru
          _
      $region44: #{tpu_custom_call.1} parent=5 // pred_fallthru
        _
      %p352 = scmp.le.s32.totalorder 1, %s28
      %p353 = scmp.lt.s32.totalorder %s28, 3
      %p354 = pnand %p352, %p353
      %p355 = pneg %p354
      // Predicated region
      $region49: #{tpu_custom_call.1} parent=5 // pred_check
        _
      $region50: #{tpu_custom_call.1} parent=5 // pred_check_branch
        %357 = sbr.rel (%p354) target = $region52
      $region51: #{tpu_custom_call.1} parent=5 // pred_region
        %s358 = ssub.s32 %s28, 1
        // Predicated region
        $region53: #{tpu_custom_call.1} parent=51 // pred_check
          %p359 = pneg %p49
        $region54: #{tpu_custom_call.1} parent=51 // pred_check_branch
          %361 = sbr.rel (%p359) target = $region56
        $region55: #{tpu_custom_call.1} parent=51 // pred_region
          %363 = dma.done [#allocation5], 16
        $region56: #{tpu_custom_call.1} parent=51 // pred_fallthru
          _
        %s364 = sand.u32 %s62, 1
        %s365 = scalar_lea.sflag [#allocation3], %s364
        %s366 = sand.u32 %s62, 1
        %s367 = smul.addr %s366, 4
        %s368 = scalar_lea.vmem [#allocation6], %s367
        // Predicated region
        $region57: #{tpu_custom_call.1} parent=51 // pred_check
          %p369 = pneg %p75
        $region58: #{tpu_custom_call.1} parent=51 // pred_check_branch
          %371 = sbr.rel (%p369) target = $region60
        $region59: #{tpu_custom_call.1} parent=51 // pred_region
          %373 = dma.done %s365, 64
        $region60: #{tpu_custom_call.1} parent=51 // pred_fallthru
          _
        // Predicated region
        $region61: #{tpu_custom_call.1} parent=51 // pred_check
          %p374 = pneg %p96
        $region62: #{tpu_custom_call.1} parent=51 // pred_check_branch
          %376 = sbr.rel (%p374) target = $region64
        $region63: #{tpu_custom_call.1} parent=51 // pred_region
          %378 = dma.done [#allocation8], 256
        $region64: #{tpu_custom_call.1} parent=51 // pred_fallthru
          _
        // Predicated region
        $region65: #{tpu_custom_call.1} parent=51 // pred_check
          %p379 = pneg %p138
        $region66: #{tpu_custom_call.1} parent=51 // pred_check_branch
          %381 = sbr.rel (%p379) target = $region68
        $region67: #{tpu_custom_call.1} parent=51 // pred_region
          %383 = dma.done [#allocation8], 1024
        $region68: #{tpu_custom_call.1} parent=51 // pred_fallthru
          _
        // Predicated region
        $region69: #{tpu_custom_call.1} parent=51 // pred_check
          %p384 = pneg %p180
        $region70: #{tpu_custom_call.1} parent=51 // pred_check_branch
          %386 = sbr.rel (%p384) target = $region72
        $region71: #{tpu_custom_call.1} parent=51 // pred_region
          %388 = dma.done [#allocation11], 1024
        $region72: #{tpu_custom_call.1} parent=51 // pred_fallthru
          _
        %389 = sfence
        %p390 = pneg %p49
        %p391 = pneg %p46
        %s392 = sand.u32 %s62, 1
        %s393 = scalar_lea.sflag [#allocation3], %s392
        %s394 = sand.u32 %s62, 1
        %s395 = smul.addr %s394, 4
        %s396 = scalar_lea.vmem [#allocation6], %s395
        %p397 = pneg %p75
        %p398 = pneg %p72
        %p399 = pneg %p96
        %p400 = pneg %p93
        %p401 = pneg %p117
        %p402 = pneg %p114
        %p403 = pneg %p138
        %p404 = pneg %p135
        %p405 = pneg %p159
        %p406 = pneg %p156
        %p407 = pneg %p180
        %p408 = pneg %p177
        %p409 = pneg %p201
        %p410 = pneg %p198
        %p411 = pneg %p227
        %p412 = pneg %p224
        %s413 = sand.u32 %s214, 1
        %s414 = scalar_lea.sflag [#allocation4], %s413
        %s415 = sand.u32 %s214, 1
        %s416 = smul.addr %s415, 4
        %s417 = scalar_lea.vmem [#allocation12], %s416
        %p418 = pneg %p253
        %p419 = pneg %p250
        %s420 = sand.u32 %s240, 1
        %s421 = scalar_lea.sflag [#allocation14], %s420
        %s422 = sand.u32 %s240, 1
        %s423 = smul.addr %s422, 4
        %s424 = scalar_lea.vmem [#allocation13], %s423
        %v426 = vld [vmem:[%s368] sm:$0xf]
        %v427 = vld [vmem:[#allocation7] sm:$0xf]
        %v428 = vld [vmem:[#allocation7 + $0x4] sm:$0xf]
        %v429 = vld [vmem:[#allocation7 + $0x8] sm:$0xf]
        %v430 = vld [vmem:[#allocation7 + $0xc] sm:$0xf]
        %v431 = vld [vmem:[%s3] sm:$0x1]
        %v433 = vperm.slane %v431, 0
        %v439 = vunpack.c.l.b16 %v427
        %v440 = vunpack.c.l.b16 %v428
        %v441 = vunpack.c.l.b16 %v429
        %v442 = vunpack.c.l.b16 %v430
        %v443 = vpack.c.b16 %v440, %v439
        %v444 = vpack.c.b16 %v442, %v441
        %vm447 = vcmask 261120
        %v449 = vsel %vm447, %v426, 0
        %451 = vmatpush.bf16.msra.mxu0 0
        %452 = vmatpush.bf16.msra.mxu0 0
        %453 = vmatpush.bf16.msra.mxu0 0
        %454 = vmatpush.bf16.msra.mxu0 0
        %455 = vmatpush.bf16.msra.mxu0 0
        %456 = vmatpush.bf16.msra.mxu0 0
        %457 = vmatpush.bf16.msra.mxu0 %v444
        %458 = vmatpush.bf16.msra.mxu0 %v443
        %459 = vmatmul.bf16.gmra.mxu0 %v449
        %v460 = vpop.f32.mrf.mxu0
        %v461 = vadd.f32 %v433, %v460
        %v462 = vpop.f32.mrf.mxu0
        %463 = vdwg.mxu0
        %464 = vadd.xlane.f32.xlu0 %v461
        %v465 = vpop.xlane.xlu0 %464
        %v466 = vmul.f32 %v461, %v461
        %467 = vadd.xlane.f32.xlu0 %v466
        %v468 = vpop.xlane.xlu0 %467
        %v469 = vmul.f32 %v465, 0.015625
        %v470 = vmul.f32 %v468, 0.015625
        %v471 = vmul.f32 %v469, %v469
        %v472 = vsub.f32 %v470, %v471
        %v473 = vmax.f32 %v472, 0.0
        %v474 = vsub.f32 %v461, %v469
        %v475 = vadd.f32 %v473, 1e-05
        %v476 = vrsqrt.pop %v475
        %v477 = vmul.f32 %v476, %v475
        %v478 = vmul.f32 %v477, %v476
        %v479 = vmul.f32 0.5, %v478
        %v480 = vsub.f32 1.5, %v479
        %v481 = vmul.f32 %v476, %v480
        %vm482 = vweird.f32 %v475
        %vm483 = vweird.f32 %v476
        %vm484 = vmor %vm482, %vm483
        %v485 = vsel %vm484, %v476, %v481
        %v486 = vmul.f32 %v474, %v485
        %s487 = sld [smem:[#allocation2]]
        %vm488 = vcmp.gt.f32.partialorder %v486, 0.0
        %v489 = vstv %s487
        %v490 = vmul.f32 %v489, %v486
        %v491 = vsel %vm488, %v486, %v490
        %v492 = vld [vmem:[#allocation9] sm:$0xf]
        %v493 = vld [vmem:[#allocation9 + $0x4] sm:$0xf]
        %v494 = vld [vmem:[#allocation9 + $0x8] sm:$0xf]
        %v495 = vld [vmem:[#allocation9 + $0xc] sm:$0xf]
        %v496 = vld [vmem:[#allocation9 + $0x10] sm:$0xf]
        %v497 = vld [vmem:[#allocation9 + $0x14] sm:$0xf]
        %v498 = vld [vmem:[#allocation9 + $0x18] sm:$0xf]
        %v499 = vld [vmem:[#allocation9 + $0x1c] sm:$0xf]
        %v500 = vld [vmem:[#allocation9 + $0x20] sm:$0xf]
        %v501 = vld [vmem:[#allocation9 + $0x24] sm:$0xf]
        %v502 = vld [vmem:[#allocation9 + $0x28] sm:$0xf]
        %v503 = vld [vmem:[#allocation9 + $0x2c] sm:$0xf]
        %v504 = vld [vmem:[#allocation9 + $0x30] sm:$0xf]
        %v505 = vld [vmem:[#allocation9 + $0x34] sm:$0xf]
        %v506 = vld [vmem:[#allocation9 + $0x38] sm:$0xf]
        %v507 = vld [vmem:[#allocation9 + $0x3c] sm:$0xf]
        %v508 = vld [vmem:[%s5] sm:$0x1]
        %v509 = vpack.c.bf16 %v491, %v491
        %v511 = vperm.slane %v508, 0
        %v529 = vunpack.c.l.b16 %v492
        %v530 = vunpack.c.l.b16 %v493
        %v531 = vunpack.c.l.b16 %v494
        %v532 = vunpack.c.l.b16 %v495
        %v533 = vunpack.c.l.b16 %v496
        %v534 = vunpack.c.l.b16 %v497
        %v535 = vunpack.c.l.b16 %v498
        %v536 = vunpack.c.l.b16 %v499
        %v537 = vunpack.c.l.b16 %v500
        %v538 = vunpack.c.l.b16 %v501
        %v539 = vunpack.c.l.b16 %v502
        %v540 = vunpack.c.l.b16 %v503
        %v541 = vunpack.c.l.b16 %v504
        %v542 = vunpack.c.l.b16 %v505
        %v543 = vunpack.c.l.b16 %v506
        %v544 = vunpack.c.l.b16 %v507
        %v545 = vpack.c.b16 %v530, %v529
        %v546 = vpack.c.b16 %v532, %v531
        %v547 = vpack.c.b16 %v534, %v533
        %v548 = vpack.c.b16 %v536, %v535
        %v549 = vpack.c.b16 %v538, %v537
        %v550 = vpack.c.b16 %v540, %v539
        %v551 = vpack.c.b16 %v542, %v541
        %v552 = vpack.c.b16 %v544, %v543
        %561 = vmatpush.bf16.msra.mxu0 %v552
        %562 = vmatpush.bf16.msra.mxu0 %v551
        %563 = vmatpush.bf16.msra.mxu0 %v550
        %564 = vmatpush.bf16.msra.mxu0 %v549
        %565 = vmatpush.bf16.msra.mxu0 %v548
        %566 = vmatpush.bf16.msra.mxu0 %v547
        %567 = vmatpush.bf16.msra.mxu0 %v546
        %568 = vmatpush.bf16.msra.mxu0 %v545
        %569 = vmatmul.bf16.gmra.mxu0 %v509
        %v570 = vpop.f32.mrf.mxu0
        %v571 = vadd.f32 %v511, %v570
        %v572 = vpop.f32.mrf.mxu0
        %573 = vdwg.mxu0
        %574 = vadd.xlane.f32.xlu0 %v571
        %v575 = vpop.xlane.xlu0 %574
        %v576 = vmul.f32 %v571, %v571
        %577 = vadd.xlane.f32.xlu0 %v576
        %v578 = vpop.xlane.xlu0 %577
        %v579 = vmul.f32 %v575, 0.03125
        %v580 = vmul.f32 %v578, 0.03125
        %v581 = vmul.f32 %v579, %v579
        %v582 = vsub.f32 %v580, %v581
        %v583 = vmax.f32 %v582, 0.0
        %v584 = vsub.f32 %v571, %v579
        %v585 = vadd.f32 %v583, 1e-05
        %v586 = vrsqrt.pop %v585
        %v587 = vmul.f32 %v586, %v585
        %v588 = vmul.f32 %v587, %v586
        %v589 = vmul.f32 0.5, %v588
        %v590 = vsub.f32 1.5, %v589
        %v591 = vmul.f32 %v586, %v590
        %vm592 = vweird.f32 %v585
        %vm593 = vweird.f32 %v586
        %vm594 = vmor %vm592, %vm593
        %v595 = vsel %vm594, %v586, %v591
        %v596 = vmul.f32 %v584, %v595
        %s597 = sld [smem:[#allocation2 + $0x1]]
        %vm598 = vcmp.gt.f32.partialorder %v596, 0.0
        %v599 = vstv %s597
        %v600 = vmul.f32 %v599, %v596
        %v601 = vsel %vm598, %v596, %v600
        %v602 = vpack.c.bf16 %v601, %v601
        %603 = vst [vmem:[%s417] sm:$0xf] %v602
        %v604 = vld [vmem:[#allocation10] sm:$0xf]
        %v605 = vld [vmem:[#allocation10 + $0x4] sm:$0xf]
        %v606 = vld [vmem:[#allocation10 + $0x8] sm:$0xf]
        %v607 = vld [vmem:[#allocation10 + $0xc] sm:$0xf]
        %v608 = vld [vmem:[#allocation10 + $0x10] sm:$0xf]
        %v609 = vld [vmem:[#allocation10 + $0x14] sm:$0xf]
        %v610 = vld [vmem:[#allocation10 + $0x18] sm:$0xf]
        %v611 = vld [vmem:[#allocation10 + $0x1c] sm:$0xf]
        %v612 = vld [vmem:[#allocation10 + $0x20] sm:$0xf]
        %v613 = vld [vmem:[#allocation10 + $0x24] sm:$0xf]
        %v614 = vld [vmem:[#allocation10 + $0x28] sm:$0xf]
        %v615 = vld [vmem:[#allocation10 + $0x2c] sm:$0xf]
        %v616 = vld [vmem:[#allocation10 + $0x30] sm:$0xf]
        %v617 = vld [vmem:[#allocation10 + $0x34] sm:$0xf]
        %v618 = vld [vmem:[#allocation10 + $0x38] sm:$0xf]
        %v619 = vld [vmem:[#allocation10 + $0x3c] sm:$0xf]
        %v620 = vld [vmem:[%s7] sm:$0x1]
        %v622 = vperm.slane %v620, 0
        %v640 = vunpack.c.l.b16 %v604
        %v641 = vunpack.c.l.b16 %v605
        %v642 = vunpack.c.l.b16 %v606
        %v643 = vunpack.c.l.b16 %v607
        %v644 = vunpack.c.l.b16 %v608
        %v645 = vunpack.c.l.b16 %v609
        %v646 = vunpack.c.l.b16 %v610
        %v647 = vunpack.c.l.b16 %v611
        %v648 = vunpack.c.l.b16 %v612
        %v649 = vunpack.c.l.b16 %v613
        %v650 = vunpack.c.l.b16 %v614
        %v651 = vunpack.c.l.b16 %v615
        %v652 = vunpack.c.l.b16 %v616
        %v653 = vunpack.c.l.b16 %v617
        %v654 = vunpack.c.l.b16 %v618
        %v655 = vunpack.c.l.b16 %v619
        %v656 = vpack.c.b16 %v641, %v640
        %v657 = vpack.c.b16 %v643, %v642
        %v658 = vpack.c.b16 %v645, %v644
        %v659 = vpack.c.b16 %v647, %v646
        %v660 = vpack.c.b16 %v649, %v648
        %v661 = vpack.c.b16 %v651, %v650
        %v662 = vpack.c.b16 %v653, %v652
        %v663 = vpack.c.b16 %v655, %v654
        %672 = vmatpush.bf16.msra.mxu0 %v663
        %673 = vmatpush.bf16.msra.mxu0 %v662
        %674 = vmatpush.bf16.msra.mxu0 %v661
        %675 = vmatpush.bf16.msra.mxu0 %v660
        %676 = vmatpush.bf16.msra.mxu0 %v659
        %677 = vmatpush.bf16.msra.mxu0 %v658
        %678 = vmatpush.bf16.msra.mxu0 %v657
        %679 = vmatpush.bf16.msra.mxu0 %v656
        %680 = vmatmul.bf16.gmra.mxu0 %v602
        %v681 = vpop.f32.mrf.mxu0
        %v682 = vadd.f32 %v622, %v681
        %v683 = vpop.f32.mrf.mxu0
        %684 = vdwg.mxu0
        %v685 = vxor.u32 %v682, 2147483648
        %v686 = vmul.f32 %v685, 1.442695
        %v687 = vpow.pop %v686
        %v688 = vadd.f32 %v687, 1.0
        %v689 = vrcp.pop %v688
        %v690 = vmul.f32 %v688, %v689
        %v691 = vsub.f32 1.0, %v690
        %v692 = vmul.f32 %v689, %v691
        %v693 = vadd.f32 %v689, %v692
        %vm694 = vweird.f32 %v688
        %vm695 = vweird.f32 %v689
        %vm696 = vmor %vm694, %vm695
        %v697 = vsel %vm696, %v689, %v693
        %v698 = vand.u32 2147483647, %v688
        %vm699 = vcmp.eq.f32.partialorder %v698, 8.507059e+37
        %v700 = vand.u32 %v688, 2147483648
        %v701 = vor.u32 1.1754944e-38, %v700
        %v702 = vsel %vm699, %v701, %v697
        %v703 = vmul.f32 1.0, %v702
        %v704 = vpack.c.bf16 %v703, %v703
        %705 = vst [vmem:[%s424] sm:$0xf] %v704
        %s706 = sand.u32 %s214, 1
        %s707 = scalar_lea.sflag [#allocation4], %s706
        %s708 = sand.u32 %s214, 1
        %s709 = smul.addr %s708, 4
        %s710 = scalar_lea.vmem [#allocation12], %s709
        %s711 = sand.u32 %s240, 1
        %s712 = scalar_lea.sflag [#allocation14], %s711
        %s713 = sand.u32 %s240, 1
        %s714 = smul.addr %s713, 4
        %s715 = scalar_lea.vmem [#allocation13], %s714
        // Predicated region
        $region73: #{tpu_custom_call.1} parent=51 // pred_check
          %p716 = pneg %p224
        $region74: #{tpu_custom_call.1} parent=51 // pred_check_branch
          %718 = sbr.rel (%p716) target = $region76
        $region75: #{tpu_custom_call.1} parent=51 // pred_region
          %720 = vsyncadd %s707, 0
          %s721 = smul.addr %s33, 4
          %s722 = scalar_lea.hbm %s8, %s721
          %s724 = sshll.u32 %s710, 4
          %s725 = int_to_ptr.vmem [resolvable:$true] %s724
          %s726 = sshll.u32 %s722, 4
          %s727 = int_to_ptr.hbm [resolvable:$true] %s726
          %729 = dma.vmem_to_hbm [thread:$0]  %s725, 64, %s727, %s707
        $region76: #{tpu_custom_call.1} parent=51 // pred_fallthru
          _
        // Predicated region
        $region77: #{tpu_custom_call.1} parent=51 // pred_check
          %p730 = pneg %p250
        $region78: #{tpu_custom_call.1} parent=51 // pred_check_branch
          %732 = sbr.rel (%p730) target = $region80
        $region79: #{tpu_custom_call.1} parent=51 // pred_region
          %734 = vsyncadd %s712, 0
          %s735 = smul.addr %s33, 4
          %s736 = scalar_lea.hbm %s9, %s735
          %s738 = sshll.u32 %s715, 4
          %s739 = int_to_ptr.vmem [resolvable:$true] %s738
          %s740 = sshll.u32 %s736, 4
          %s741 = int_to_ptr.hbm [resolvable:$true] %s740
          %743 = dma.vmem_to_hbm [thread:$0]  %s739, 64, %s741, %s712
        $region80: #{tpu_custom_call.1} parent=51 // pred_fallthru
          _
      $region52: #{tpu_custom_call.1} parent=5 // pred_fallthru
        _
      %p744 = scmp.le.s32.totalorder 2, %s28
      // Predicated region
      $region81: #{tpu_custom_call.1} parent=5 // pred_check
        %p745 = pneg %p744
      $region82: #{tpu_custom_call.1} parent=5 // pred_check_branch
        %747 = sbr.rel (%p745) target = $region84
      $region83: #{tpu_custom_call.1} parent=5 // pred_region
        %s748 = ssub.s32 %s28, 2
        // Predicated region
        $region85: #{tpu_custom_call.1} parent=83 // pred_check
          %p749 = pneg %p230
        $region86: #{tpu_custom_call.1} parent=83 // pred_check_branch
          %751 = sbr.rel (%p749) target = $region88
        $region87: #{tpu_custom_call.1} parent=83 // pred_region
          %s752 = sand.u32 %s215, 1
          %s753 = scalar_lea.sflag [#allocation4], %s752
          %s754 = sand.u32 %s215, 1
          %s755 = smul.addr %s754, 4
          %s756 = scalar_lea.vmem [#allocation12], %s755
          %758 = dma.done %s753, 64
        $region88: #{tpu_custom_call.1} parent=83 // pred_fallthru
          _
        // Predicated region
        $region89: #{tpu_custom_call.1} parent=83 // pred_check
          %p759 = pneg %p256
        $region90: #{tpu_custom_call.1} parent=83 // pred_check_branch
          %761 = sbr.rel (%p759) target = $region92
        $region91: #{tpu_custom_call.1} parent=83 // pred_region
          %s762 = sand.u32 %s241, 1
          %s763 = scalar_lea.sflag [#allocation14], %s762
          %s764 = sand.u32 %s241, 1
          %s765 = smul.addr %s764, 4
          %s766 = scalar_lea.vmem [#allocation13], %s765
          %768 = dma.done %s763, 64
        $region92: #{tpu_custom_call.1} parent=83 // pred_fallthru
          _
      $region84: #{tpu_custom_call.1} parent=5 // pred_fallthru
        _
    $region6: #{tpu_custom_call.1} parent=1 // loop_footer
      %s32 = sadd.s32 1, %s28
    $region7: #{tpu_custom_call.1} parent=1 // loop_footer_branch
      %27 = sbr.rel target = $region3
    $region8: #{tpu_custom_call.1} parent=1 // loop_exit
      _
    %769 = vsyncpa [#allocation3], 1
    %s770 = scalar_lea.sflag [#allocation3], 1
    %771 = vsyncpa %s770, 1
    %772 = vsyncpa [#allocation8], 1
    %773 = vsyncpa [#allocation11], 1
    %774 = vsyncpa [#allocation4], 1
    %s775 = scalar_lea.sflag [#allocation4], 1
    %776 = vsyncpa %s775, 1
    %777 = vsyncpa [#allocation14], 1
    %s778 = scalar_lea.sflag [#allocation14], 1
    %779 = vsyncpa %s778, 1
    %780 = vsyncpa [#allocation5], 1
    %s781 = scalar_lea.sflag [#allocation5], 1
    %782 = vsyncpa %s781, 1

// kernel: tpu_custom_call.1
$region0: #{tpu_custom_call.1}
  #allocation0 [shape = 'u32[]', space=smem, size = 0x4, offset = 0x4, fixed_abs, tag = 'smem constant byte address 0x4 - core index']
  #allocation1 [shape = 'u32[72,128]{1,0:T(1,128)}', space=vmem, size = 0x9000, scoped, tag = 'internal scratch']
  %s0 = inlined_call_operand.hbm [shape: f32[2], index: 0, kind: input, shape index: {}]
  %s1 = inlined_call_operand.hbm [shape: bf16[16,32], index: 1, kind: input, shape index: {}]
  %s2 = inlined_call_operand.hbm [shape: bf16[32,128], index: 2, kind: input, shape index: {}]
  %s3 = inlined_call_operand.vmem [shape: f32[1,128], index: 3, kind: input, shape index: {}]
  %s4 = inlined_call_operand.hbm [shape: bf16[128,128], index: 4, kind: input, shape index: {}]
  %s5 = inlined_call_operand.vmem [shape: f32[1,128], index: 5, kind: input, shape index: {}]
  %s6 = inlined_call_operand.hbm [shape: bf16[128,128], index: 6, kind: input, shape index: {}]
  %s7 = inlined_call_operand.vmem [shape: f32[1,128], index: 7, kind: input, shape index: {}]
  %s8 = inlined_call_operand.hbm [shape: bf16[16,128], index: 8, kind: output, shape index: {0}]
  %s9 = inlined_call_operand.hbm [shape: bf16[16,128], index: 9, kind: output, shape index: {1}]
  %10 = xla_tuple %s8, %s9
  %s11 = sld [smem:[#allocation0]]
  $region93: #{tpu_custom_call.1} parent=0
    _
  %s13 = ssub.s32 1, %s11
  %s14 = scalar_select 0, %s13, %s11
  $region1: #{tpu_custom_call.1} parent=0
    #allocation2 [shape = 'u8[512]{0}', space=smem, size = 0x200, scoped, tag = 'input window, operand 0, single buffered']
    #allocation3 [shape = 's32[2]{0}', space=sflag, size = 0x8, scoped, tag = 'scoped memory for tpu_custom_call.1']
    #allocation4 [shape = 's32[2]{0}', space=sflag, size = 0x8, scoped, tag = 'scoped memory for tpu_custom_call.1']
    #allocation5 [shape = 's32[2]{0}', space=sflag, size = 0x8, scoped, tag = 'scoped memory for tpu_custom_call.1']
    #allocation6 [shape = 'u8[4096]{0}', space=vmem, size = 0x1000, scoped, tag = 'input window, operand 1']
    #allocation7 [shape = 'u8[8192]{0}', space=vmem, size = 0x2000, scoped, tag = 'input window, operand 2, single buffered']
    #allocation8 [shape = 's32[1]{0}', space=sflag, size = 0x4, scoped, tag = 'scoped memory for tpu_custom_call.1']
    #allocation9 [shape = 'u8[32768]{0}', space=vmem, size = 0x8000, scoped, tag = 'input window, operand 4, single buffered']
    #allocation10 [shape = 'u8[32768]{0}', space=vmem, size = 0x8000, scoped, tag = 'input window, operand 6, single buffered']
    #allocation11 [shape = 's32[1]{0}', space=sflag, size = 0x4, scoped, tag = 'scoped memory for tpu_custom_call.1']
    #allocation12 [shape = 'u8[4096]{0}', space=vmem, size = 0x1000, scoped, tag = 'output window, operand 0']
    #allocation13 [shape = 'u8[4096]{0}', space=vmem, size = 0x1000, scoped, tag = 'output window, operand 1']
    #allocation14 [shape = 's32[2]{0}', space=sflag, size = 0x8, scoped, tag = 'scoped memory for tpu_custom_call.1']
    %15 = vsyncpa [#allocation5], 0
    %16 = vsyncpa [#allocation3], 0
    %s17 = scalar_lea.sflag [#allocation3], 1
    %18 = vsyncpa %s17, 0
    %19 = vsyncpa [#allocation8], 0
    %20 = vsyncpa [#allocation11], 0
    %21 = vsyncpa [#allocation4], 0
    %s22 = scalar_lea.sflag [#allocation4], 1
    %23 = vsyncpa %s22, 0
    %24 = vsyncpa [#allocation14], 0
    %s25 = scalar_lea.sflag [#allocation14], 1
    %26 = vsyncpa %s25, 0
    loop: start=0, step=1, limit=4
    $region2: #{tpu_custom_call.1} parent=1 // loop_pre_header
      _
    $region3: #{tpu_custom_call.1} parent=1 // loop_header
      %s28 = sphi 0, %s32
      %p29 = scmp.ge.s32.totalorder %s28, 4
      %s36 = sphi 0, %s36
      %s38 = sphi 0, %s36
      %s39 = sphi 0, %s38
      %s53 = sphi 0, %s39
      %s59 = sphi 0, %s61
      %s62 = sphi 0, %s59
      %s63 = sphi 0, %s62
      %s79 = sphi 0, %s63
      %s83 = sphi 0, %s83
      %s85 = sphi 0, %s83
      %s86 = sphi 0, %s85
      %s100 = sphi 0, %s86
      %s104 = sphi 0, %s104
      %s106 = sphi 0, %s104
      %s107 = sphi 0, %s106
      %s121 = sphi 0, %s107
      %s125 = sphi 0, %s125
      %s127 = sphi 0, %s125
      %s128 = sphi 0, %s127
      %s142 = sphi 0, %s128
      %s146 = sphi 0, %s146
      %s148 = sphi 0, %s146
      %s149 = sphi 0, %s148
      %s163 = sphi 0, %s149
      %s167 = sphi 0, %s167
      %s169 = sphi 0, %s167
      %s170 = sphi 0, %s169
      %s184 = sphi 0, %s170
      %s188 = sphi 0, %s188
      %s190 = sphi 0, %s188
      %s191 = sphi 0, %s190
      %s205 = sphi 0, %s191
      %s211 = sphi 0, %s213
      %s214 = sphi 0, %s211
      %s215 = sphi 0, %s214
      %s231 = sphi 0, %s215
      %s237 = sphi 0, %s239
      %s240 = sphi 0, %s237
      %s241 = sphi 0, %s240
      %s257 = sphi 0, %s241
    $region4: #{tpu_custom_call.1} parent=1 // loop_header_branch
      %31 = sbr.rel (%p29) target = $region8
    $region5: #{tpu_custom_call.1} parent=1 // loop_body
      %s33 = ssub.s32 %s28, 1
      %s34 = ssub.s32 %s28, 2
      %s35 = sadd.s32 %s28, 1
      %s37 = sadd.s32 %s36, 1
      %p40 = scmp.eq.s32.totalorder %s28, 1
      %p41 = scmp.ne.s32.totalorder %s36, %s38
      %p42 = scmp.eq.s32.totalorder %s28, 0
      %p43 = por %p41, %p42
      %p44 = scmp.ne.s32.totalorder %s36, %s38
      %p45 = scmp.eq.s32.totalorder %s33, 1
      %p46 = por %p44, %p45
      %p47 = scmp.ne.s32.totalorder %s38, %s39
      %p48 = scmp.eq.s32.totalorder %s33, 0
      %p49 = por %p47, %p48
      %p50 = scmp.ne.s32.totalorder %s38, %s39
      %p51 = scmp.eq.s32.totalorder %s34, 1
      %p52 = por %p50, %p51
      %p54 = scmp.ne.s32.totalorder %s39, %s53
      %p55 = scmp.eq.s32.totalorder %s34, 0
      %p56 = por %p54, %p55
      %s57 = ssub.s32 %s28, %s35
      %p58 = scmp.eq.s32.totalorder %s57, 0
      %s60 = sadd.s32 %s59, 1
      %s61 = scalar_select %p58, %s59, %s60
      %p64 = pneg %p58
      %p65 = scmp.eq.s32.totalorder %s28, 1
      %p66 = por %p64, %p65
      %p67 = scmp.ne.s32.totalorder %s59, %s62
      %p68 = scmp.eq.s32.totalorder %s28, 0
      %p69 = por %p67, %p68
      %p70 = scmp.ne.s32.totalorder %s59, %s62
      %p71 = scmp.eq.s32.totalorder %s33, 1
      %p72 = por %p70, %p71
      %p73 = scmp.ne.s32.totalorder %s62, %s63
      %p74 = scmp.eq.s32.totalorder %s33, 0
      %p75 = por %p73, %p74
      %p76 = scmp.ne.s32.totalorder %s62, %s63
      %p77 = scmp.eq.s32.totalorder %s34, 1
      %p78 = por %p76, %p77
      %p80 = scmp.ne.s32.totalorder %s63, %s79
      %p81 = scmp.eq.s32.totalorder %s34, 0
      %p82 = por %p80, %p81
      %s84 = sadd.s32 %s83, 1
      %p87 = scmp.eq.s32.totalorder %s28, 1
      %p88 = scmp.ne.s32.totalorder %s83, %s85
      %p89 = scmp.eq.s32.totalorder %s28, 0
      %p90 = por %p88, %p89
      %p91 = scmp.ne.s32.totalorder %s83, %s85
      %p92 = scmp.eq.s32.totalorder %s33, 1
      %p93 = por %p91, %p92
      %p94 = scmp.ne.s32.totalorder %s85, %s86
      %p95 = scmp.eq.s32.totalorder %s33, 0
      %p96 = por %p94, %p95
      %p97 = scmp.ne.s32.totalorder %s85, %s86
      %p98 = scmp.eq.s32.totalorder %s34, 1
      %p99 = por %p97, %p98
      %p101 = scmp.ne.s32.totalorder %s86, %s100
      %p102 = scmp.eq.s32.totalorder %s34, 0
      %p103 = por %p101, %p102
      %s105 = sadd.s32 %s104, 1
      %p108 = scmp.eq.s32.totalorder %s28, 1
      %p109 = scmp.ne.s32.totalorder %s104, %s106
      %p110 = scmp.eq.s32.totalorder %s28, 0
      %p111 = por %p109, %p110
      %p112 = scmp.ne.s32.totalorder %s104, %s106
      %p113 = scmp.eq.s32.totalorder %s33, 1
      %p114 = por %p112, %p113
      %p115 = scmp.ne.s32.totalorder %s106, %s107
      %p116 = scmp.eq.s32.totalorder %s33, 0
      %p117 = por %p115, %p116
      %p118 = scmp.ne.s32.totalorder %s106, %s107
      %p119 = scmp.eq.s32.totalorder %s34, 1
      %p120 = por %p118, %p119
      %p122 = scmp.ne.s32.totalorder %s107, %s121
      %p123 = scmp.eq.s32.totalorder %s34, 0
      %p124 = por %p122, %p123
      %s126 = sadd.s32 %s125, 1
      %p129 = scmp.eq.s32.totalorder %s28, 1
      %p130 = scmp.ne.s32.totalorder %s125, %s127
      %p131 = scmp.eq.s32.totalorder %s28, 0
      %p132 = por %p130, %p131
      %p133 = scmp.ne.s32.totalorder %s125, %s127
      %p134 = scmp.eq.s32.totalorder %s33, 1
      %p135 = por %p133, %p134
      %p136 = scmp.ne.s32.totalorder %s127, %s128
      %p137 = scmp.eq.s32.totalorder %s33, 0
      %p138 = por %p136, %p137
      %p139 = scmp.ne.s32.totalorder %s127, %s128
      %p140 = scmp.eq.s32.totalorder %s34, 1
      %p141 = por %p139, %p140
      %p143 = scmp.ne.s32.totalorder %s128, %s142
      %p144 = scmp.eq.s32.totalorder %s34, 0
      %p145 = por %p143, %p144
      %s147 = sadd.s32 %s146, 1
      %p150 = scmp.eq.s32.totalorder %s28, 1
      %p151 = scmp.ne.s32.totalorder %s146, %s148
      %p152 = scmp.eq.s32.totalorder %s28, 0
      %p153 = por %p151, %p152
      %p154 = scmp.ne.s32.totalorder %s146, %s148
      %p155 = scmp.eq.s32.totalorder %s33, 1
      %p156 = por %p154, %p155
      %p157 = scmp.ne.s32.totalorder %s148, %s149
      %p158 = scmp.eq.s32.totalorder %s33, 0
      %p159 = por %p157, %p158
      %p160 = scmp.ne.s32.totalorder %s148, %s149
      %p161 = scmp.eq.s32.totalorder %s34, 1
      %p162 = por %p160, %p161
      %p164 = scmp.ne.s32.totalorder %s149, %s163
      %p165 = scmp.eq.s32.totalorder %s34, 0
      %p166 = por %p164, %p165
      %s168 = sadd.s32 %s167, 1
      %p171 = scmp.eq.s32.totalorder %s28, 1
      %p172 = scmp.ne.s32.totalorder %s167, %s169
      %p173 = scmp.eq.s32.totalorder %s28, 0
      %p174 = por %p172, %p173
      %p175 = scmp.ne.s32.totalorder %s167, %s169
      %p176 = scmp.eq.s32.totalorder %s33, 1
      %p177 = por %p175, %p176
      %p178 = scmp.ne.s32.totalorder %s169, %s170
      %p179 = scmp.eq.s32.totalorder %s33, 0
      %p180 = por %p178, %p179
      %p181 = scmp.ne.s32.totalorder %s169, %s170
      %p182 = scmp.eq.s32.totalorder %s34, 1
      %p183 = por %p181, %p182
      %p185 = scmp.ne.s32.totalorder %s170, %s184
      %p186 = scmp.eq.s32.totalorder %s34, 0
      %p187 = por %p185, %p186
      %s189 = sadd.s32 %s188, 1
      %p192 = scmp.eq.s32.totalorder %s28, 1
      %p193 = scmp.ne.s32.totalorder %s188, %s190
      %p194 = scmp.eq.s32.totalorder %s28, 0
      %p195 = por %p193, %p194
      %p196 = scmp.ne.s32.totalorder %s188, %s190
      %p197 = scmp.eq.s32.totalorder %s33, 1
      %p198 = por %p196, %p197
      %p199 = scmp.ne.s32.totalorder %s190, %s191
      %p200 = scmp.eq.s32.totalorder %s33, 0
      %p201 = por %p199, %p200
      %p202 = scmp.ne.s32.totalorder %s190, %s191
      %p203 = scmp.eq.s32.totalorder %s34, 1
      %p204 = por %p202, %p203
      %p206 = scmp.ne.s32.totalorder %s191, %s205
      %p207 = scmp.eq.s32.totalorder %s34, 0
      %p208 = por %p206, %p207
      %s209 = ssub.s32 %s28, %s35
      %p210 = scmp.eq.s32.totalorder %s209, 0
      %s212 = sadd.s32 %s211, 1
      %s213 = scalar_select %p210, %s211, %s212
      %p216 = pneg %p210
      %p217 = scmp.eq.s32.totalorder %s28, 1
      %p218 = por %p216, %p217
      %p219 = scmp.ne.s32.totalorder %s211, %s214
      %p220 = scmp.eq.s32.totalorder %s28, 0
      %p221 = por %p219, %p220
      %p222 = scmp.ne.s32.totalorder %s211, %s214
      %p223 = scmp.eq.s32.totalorder %s33, 1
      %p224 = por %p222, %p223
      %p225 = scmp.ne.s32.totalorder %s214, %s215
      %p226 = scmp.eq.s32.totalorder %s33, 0
      %p227 = por %p225, %p226
      %p228 = scmp.ne.s32.totalorder %s214, %s215
      %p229 = scmp.eq.s32.totalorder %s34, 1
      %p230 = por %p228, %p229
      %p232 = scmp.ne.s32.totalorder %s215, %s231
      %p233 = scmp.eq.s32.totalorder %s34, 0
      %p234 = por %p232, %p233
      %s235 = ssub.s32 %s28, %s35
      %p236 = scmp.eq.s32.totalorder %s235, 0
      %s238 = sadd.s32 %s237, 1
      %s239 = scalar_select %p236, %s237, %s238
      %p242 = pneg %p236
      %p243 = scmp.eq.s32.totalorder %s28, 1
      %p244 = por %p242, %p243
      %p245 = scmp.ne.s32.totalorder %s237, %s240
      %p246 = scmp.eq.s32.totalorder %s28, 0
      %p247 = por %p245, %p246
      %p248 = scmp.ne.s32.totalorder %s237, %s240
      %p249 = scmp.eq.s32.totalorder %s33, 1
      %p250 = por %p248, %p249
      %p251 = scmp.ne.s32.totalorder %s240, %s241
      %p252 = scmp.eq.s32.totalorder %s33, 0
      %p253 = por %p251, %p252
      %p254 = scmp.ne.s32.totalorder %s240, %s241
      %p255 = scmp.eq.s32.totalorder %s34, 1
      %p256 = por %p254, %p255
      %p258 = scmp.ne.s32.totalorder %s241, %s257
      %p259 = scmp.eq.s32.totalorder %s34, 0
      %p260 = por %p258, %p259
      %p261 = scmp.le.s32.totalorder 1, %s28
      %p262 = scmp.lt.s32.totalorder %s28, 3
      %p263 = pnand %p261, %p262
      %p264 = pneg %p263
      // Predicated region
      $region9: #{tpu_custom_call.1} parent=5 // pred_check
        _
      $region10: #{tpu_custom_call.1} parent=5 // pred_check_branch
        %266 = sbr.rel (%p263) target = $region12
      $region11: #{tpu_custom_call.1} parent=5 // pred_region
        %s267 = ssub.s32 %s28, 1
        // Predicated region
        $region13: #{tpu_custom_call.1} parent=11 // pred_check
          %p268 = pneg %p49
        $region14: #{tpu_custom_call.1} parent=11 // pred_check_branch
          %270 = sbr.rel (%p268) target = $region16
        $region15: #{tpu_custom_call.1} parent=11 // pred_region
          %272 = vsyncadd [#allocation5], 0
          %s274 = sshll.u32 %s0, 4
          %s275 = int_to_ptr.hbm [resolvable:$true] %s274
          %277 = dma.hbm_to_smem %s275, 16, [#allocation2], [#allocation5]
        $region16: #{tpu_custom_call.1} parent=11 // pred_fallthru
          _
        // Predicated region
        $region17: #{tpu_custom_call.1} parent=11 // pred_check
          %p278 = pneg %p96
        $region18: #{tpu_custom_call.1} parent=11 // pred_check_branch
          %280 = sbr.rel (%p278) target = $region20
        $region19: #{tpu_custom_call.1} parent=11 // pred_region
          %282 = vsyncadd [#allocation8], 0
          %s283 = sshll.u32 %s2, 4
          %s284 = int_to_ptr.hbm [resolvable:$true] %s283
          %s285 = sshll.u32 [#allocation7], 4
          %s286 = int_to_ptr.vmem [resolvable:$true] %s285
          %291 = dma.hbm_to_vmem [thread:$0]  %s284, 256, %s286, [#allocation8], 64, 64, 4
        $region20: #{tpu_custom_call.1} parent=11 // pred_fallthru
          _
        // Predicated region
        $region21: #{tpu_custom_call.1} parent=11 // pred_check
          %p292 = pneg %p117
        $region22: #{tpu_custom_call.1} parent=11 // pred_check_branch
          %294 = sbr.rel (%p292) target = $region24
        $region23: #{tpu_custom_call.1} parent=11 // pred_region
          _
        $region24: #{tpu_custom_call.1} parent=11 // pred_fallthru
          _
        // Predicated region
        $region25: #{tpu_custom_call.1} parent=11 // pred_check
          %p295 = pneg %p138
        $region26: #{tpu_custom_call.1} parent=11 // pred_check_branch
          %297 = sbr.rel (%p295) target = $region28
        $region27: #{tpu_custom_call.1} parent=11 // pred_region
          %299 = vsyncadd [#allocation8], 0
          %s300 = sshll.u32 %s4, 4
          %s301 = int_to_ptr.hbm [resolvable:$true] %s300
          %s302 = sshll.u32 [#allocation9], 4
          %s303 = int_to_ptr.vmem [resolvable:$true] %s302
          %308 = dma.hbm_to_vmem [thread:$0]  %s301, 1024, %s303, [#allocation8], 64, 64, 4
        $region28: #{tpu_custom_call.1} parent=11 // pred_fallthru
          _
        // Predicated region
        $region29: #{tpu_custom_call.1} parent=11 // pred_check
          %p309 = pneg %p159
        $region30: #{tpu_custom_call.1} parent=11 // pred_check_branch
          %311 = sbr.rel (%p309) target = $region32
        $region31: #{tpu_custom_call.1} parent=11 // pred_region
          _
        $region32: #{tpu_custom_call.1} parent=11 // pred_fallthru
          _
        // Predicated region
        $region33: #{tpu_custom_call.1} parent=11 // pred_check
          %p312 = pneg %p180
        $region34: #{tpu_custom_call.1} parent=11 // pred_check_branch
          %314 = sbr.rel (%p312) target = $region36
        $region35: #{tpu_custom_call.1} parent=11 // pred_region
          %316 = vsyncadd [#allocation11], 0
          %s317 = sshll.u32 %s6, 4
          %s318 = int_to_ptr.hbm [resolvable:$true] %s317
          %s319 = sshll.u32 [#allocation10], 4
          %s320 = int_to_ptr.vmem [resolvable:$true] %s319
          %325 = dma.hbm_to_vmem [thread:$0]  %s318, 1024, %s320, [#allocation11], 64, 64, 4
        $region36: #{tpu_custom_call.1} parent=11 // pred_fallthru
          _
        // Predicated region
        $region37: #{tpu_custom_call.1} parent=11 // pred_check
          %p326 = pneg %p201
        $region38: #{tpu_custom_call.1} parent=11 // pred_check_branch
          %328 = sbr.rel (%p326) target = $region40
        $region39: #{tpu_custom_call.1} parent=11 // pred_region
          _
        $region40: #{tpu_custom_call.1} parent=11 // pred_fallthru
          _
      $region12: #{tpu_custom_call.1} parent=5 // pred_fallthru
        _
      %p329 = scmp.lt.s32.totalorder %s28, 2
      // Predicated region
      $region41: #{tpu_custom_call.1} parent=5 // pred_check
        %p330 = pneg %p329
      $region42: #{tpu_custom_call.1} parent=5 // pred_check_branch
        %332 = sbr.rel (%p330) target = $region44
      $region43: #{tpu_custom_call.1} parent=5 // pred_region
        // Predicated region
        $region45: #{tpu_custom_call.1} parent=43 // pred_check
          %p333 = pneg %p69
        $region46: #{tpu_custom_call.1} parent=43 // pred_check_branch
          %335 = sbr.rel (%p333) target = $region48
        $region47: #{tpu_custom_call.1} parent=43 // pred_region
          %s336 = sand.u32 %s59, 1
          %s337 = scalar_lea.sflag [#allocation3], %s336
          %s338 = sand.u32 %s59, 1
          %s339 = smul.addr %s338, 4
          %s340 = scalar_lea.vmem [#allocation6], %s339
          %342 = vsyncadd %s337, 0
          %s343 = smul.addr %s28, 4
          %s344 = scalar_lea.hbm %s1, %s343
          %s346 = sshll.u32 %s344, 4
          %s347 = int_to_ptr.hbm [resolvable:$true] %s346
          %s348 = sshll.u32 %s340, 4
          %s349 = int_to_ptr.vmem [resolvable:$true] %s348
          %351 = dma.hbm_to_vmem [thread:$0]  %s347, 64, %s349, %s337
        $region48: #{tpu_custom_call.1} parent=43 // pred_fallthru
          _
      $region44: #{tpu_custom_call.1} parent=5 // pred_fallthru
        _
      %p352 = scmp.le.s32.totalorder 1, %s28
      %p353 = scmp.lt.s32.totalorder %s28, 3
      %p354 = pnand %p352, %p353
      %p355 = pneg %p354
      // Predicated region
      $region49: #{tpu_custom_call.1} parent=5 // pred_check
        _
      $region50: #{tpu_custom_call.1} parent=5 // pred_check_branch
        %357 = sbr.rel (%p354) target = $region52
      $region51: #{tpu_custom_call.1} parent=5 // pred_region
        %s358 = ssub.s32 %s28, 1
        // Predicated region
        $region53: #{tpu_custom_call.1} parent=51 // pred_check
          %p359 = pneg %p49
        $region54: #{tpu_custom_call.1} parent=51 // pred_check_branch
          %361 = sbr.rel (%p359) target = $region56
        $region55: #{tpu_custom_call.1} parent=51 // pred_region
          %363 = dma.done [#allocation5], 16
        $region56: #{tpu_custom_call.1} parent=51 // pred_fallthru
          _
        %s364 = sand.u32 %s62, 1
        %s365 = scalar_lea.sflag [#allocation3], %s364
        %s366 = sand.u32 %s62, 1
        %s367 = smul.addr %s366, 4
        %s368 = scalar_lea.vmem [#allocation6], %s367
        // Predicated region
        $region57: #{tpu_custom_call.1} parent=51 // pred_check
          %p369 = pneg %p75
        $region58: #{tpu_custom_call.1} parent=51 // pred_check_branch
          %371 = sbr.rel (%p369) target = $region60
        $region59: #{tpu_custom_call.1} parent=51 // pred_region
          %373 = dma.done %s365, 64
        $region60: #{tpu_custom_call.1} parent=51 // pred_fallthru
          _
        // Predicated region
        $region61: #{tpu_custom_call.1} parent=51 // pred_check
          %p374 = pneg %p96
        $region62: #{tpu_custom_call.1} parent=51 // pred_check_branch
          %376 = sbr.rel (%p374) target = $region64
        $region63: #{tpu_custom_call.1} parent=51 // pred_region
          %378 = dma.done [#allocation8], 256
        $region64: #{tpu_custom_call.1} parent=51 // pred_fallthru
          _
        // Predicated region
        $region65: #{tpu_custom_call.1} parent=51 // pred_check
          %p379 = pneg %p138
        $region66: #{tpu_custom_call.1} parent=51 // pred_check_branch
          %381 = sbr.rel (%p379) target = $region68
        $region67: #{tpu_custom_call.1} parent=51 // pred_region
          %383 = dma.done [#allocation8], 1024
        $region68: #{tpu_custom_call.1} parent=51 // pred_fallthru
          _
        // Predicated region
        $region69: #{tpu_custom_call.1} parent=51 // pred_check
          %p384 = pneg %p180
        $region70: #{tpu_custom_call.1} parent=51 // pred_check_branch
          %386 = sbr.rel (%p384) target = $region72
        $region71: #{tpu_custom_call.1} parent=51 // pred_region
          %388 = dma.done [#allocation11], 1024
        $region72: #{tpu_custom_call.1} parent=51 // pred_fallthru
          _
        %389 = sfence
        %p390 = pneg %p49
        %p391 = pneg %p46
        %s392 = sand.u32 %s62, 1
        %s393 = scalar_lea.sflag [#allocation3], %s392
        %s394 = sand.u32 %s62, 1
        %s395 = smul.addr %s394, 4
        %s396 = scalar_lea.vmem [#allocation6], %s395
        %p397 = pneg %p75
        %p398 = pneg %p72
        %p399 = pneg %p96
        %p400 = pneg %p93
        %p401 = pneg %p117
        %p402 = pneg %p114
        %p403 = pneg %p138
        %p404 = pneg %p135
        %p405 = pneg %p159
        %p406 = pneg %p156
        %p407 = pneg %p180
        %p408 = pneg %p177
        %p409 = pneg %p201
        %p410 = pneg %p198
        %p411 = pneg %p227
        %p412 = pneg %p224
        %s413 = sand.u32 %s214, 1
        %s414 = scalar_lea.sflag [#allocation4], %s413
        %s415 = sand.u32 %s214, 1
        %s416 = smul.addr %s415, 4
        %s417 = scalar_lea.vmem [#allocation12], %s416
        %p418 = pneg %p253
        %p419 = pneg %p250
        %s420 = sand.u32 %s240, 1
        %s421 = scalar_lea.sflag [#allocation14], %s420
        %s422 = sand.u32 %s240, 1
        %s423 = smul.addr %s422, 4
        %s424 = scalar_lea.vmem [#allocation13], %s423
        %v426 = vld [vmem:[%s368] sm:$0xf]
        %v427 = vld [vmem:[#allocation7] sm:$0xf]
        %v428 = vld [vmem:[#allocation7 + $0x4] sm:$0xf]
        %v429 = vld [vmem:[#allocation7 + $0x8] sm:$0xf]
        %v430 = vld [vmem:[#allocation7 + $0xc] sm:$0xf]
        %v431 = vld [vmem:[%s3] sm:$0x1]
        %v433 = vperm.slane %v431, 0
        %v439 = vunpack.c.l.b16 %v427
        %v440 = vunpack.c.l.b16 %v428
        %v441 = vunpack.c.l.b16 %v429
        %v442 = vunpack.c.l.b16 %v430
        %v443 = vpack.c.b16 %v440, %v439
        %v444 = vpack.c.b16 %v442, %v441
        %vm447 = vcmask 261120
        %v449 = vsel %vm447, %v426, 0
        %451 = vmatpush.bf16.msra.mxu0 0
        %452 = vmatpush.bf16.msra.mxu0 0
        %453 = vmatpush.bf16.msra.mxu0 0
        %454 = vmatpush.bf16.msra.mxu0 0
        %455 = vmatpush.bf16.msra.mxu0 0
        %456 = vmatpush.bf16.msra.mxu0 0
        %457 = vmatpush.bf16.msra.mxu0 %v444
        %458 = vmatpush.bf16.msra.mxu0 %v443
        %459 = vmatmul.bf16.gmra.mxu0 %v449
        %v460 = vpop.f32.mrf.mxu0
        %v461 = vadd.f32 %v433, %v460
        %v462 = vpop.f32.mrf.mxu0
        %463 = vdwg.mxu0
        %464 = vadd.xlane.f32.xlu0 %v461
        %v465 = vpop.xlane.xlu0 %464
        %v466 = vmul.f32 %v461, %v461
        %467 = vadd.xlane.f32.xlu0 %v466
        %v468 = vpop.xlane.xlu0 %467
        %v469 = vmul.f32 %v465, 0.015625
        %v470 = vmul.f32 %v468, 0.015625
        %v471 = vmul.f32 %v469, %v469
        %v472 = vsub.f32 %v470, %v471
        %v473 = vmax.f32 %v472, 0.0
        %v474 = vsub.f32 %v461, %v469
        %v475 = vadd.f32 %v473, 1e-05
        %v476 = vrsqrt.pop %v475
        %v477 = vmul.f32 %v476, %v475
        %v478 = vmul.f32 %v477, %v476
        %v479 = vmul.f32 0.5, %v478
        %v480 = vsub.f32 1.5, %v479
        %v481 = vmul.f32 %v476, %v480
        %vm482 = vweird.f32 %v475
        %vm483 = vweird.f32 %v476
        %vm484 = vmor %vm482, %vm483
        %v485 = vsel %vm484, %v476, %v481
        %v486 = vmul.f32 %v474, %v485
        %s487 = sld [smem:[#allocation2]]
        %vm488 = vcmp.gt.f32.partialorder %v486, 0.0
        %v489 = vstv %s487
        %v490 = vmul.f32 %v489, %v486
        %v491 = vsel %vm488, %v486, %v490
        %v492 = vld [vmem:[#allocation9] sm:$0xf]
        %v493 = vld [vmem:[#allocation9 + $0x4] sm:$0xf]
        %v494 = vld [vmem:[#allocation9 + $0x8] sm:$0xf]
        %v495 = vld [vmem:[#allocation9 + $0xc] sm:$0xf]
        %v496 = vld [vmem:[#allocation9 + $0x10] sm:$0xf]
        %v497 = vld [vmem:[#allocation9 + $0x14] sm:$0xf]
        %v498 = vld [vmem:[#allocation9 + $0x18] sm:$0xf]
        %v499 = vld [vmem:[#allocation9 + $0x1c] sm:$0xf]
        %v500 = vld [vmem:[#allocation9 + $0x20] sm:$0xf]
        %v501 = vld [vmem:[#allocation9 + $0x24] sm:$0xf]
        %v502 = vld [vmem:[#allocation9 + $0x28] sm:$0xf]
        %v503 = vld [vmem:[#allocation9 + $0x2c] sm:$0xf]
        %v504 = vld [vmem:[#allocation9 + $0x30] sm:$0xf]
        %v505 = vld [vmem:[#allocation9 + $0x34] sm:$0xf]
        %v506 = vld [vmem:[#allocation9 + $0x38] sm:$0xf]
        %v507 = vld [vmem:[#allocation9 + $0x3c] sm:$0xf]
        %v508 = vld [vmem:[%s5] sm:$0x1]
        %v509 = vpack.c.bf16 %v491, %v491
        %v511 = vperm.slane %v508, 0
        %v529 = vunpack.c.l.b16 %v492
        %v530 = vunpack.c.l.b16 %v493
        %v531 = vunpack.c.l.b16 %v494
        %v532 = vunpack.c.l.b16 %v495
        %v533 = vunpack.c.l.b16 %v496
        %v534 = vunpack.c.l.b16 %v497
        %v535 = vunpack.c.l.b16 %v498
        %v536 = vunpack.c.l.b16 %v499
        %v537 = vunpack.c.l.b16 %v500
        %v538 = vunpack.c.l.b16 %v501
        %v539 = vunpack.c.l.b16 %v502
        %v540 = vunpack.c.l.b16 %v503
        %v541 = vunpack.c.l.b16 %v504
        %v542 = vunpack.c.l.b16 %v505
        %v543 = vunpack.c.l.b16 %v506
        %v544 = vunpack.c.l.b16 %v507
        %v545 = vpack.c.b16 %v530, %v529
        %v546 = vpack.c.b16 %v532, %v531
        %v547 = vpack.c.b16 %v534, %v533
        %v548 = vpack.c.b16 %v536, %v535
        %v549 = vpack.c.b16 %v538, %v537
        %v550 = vpack.c.b16 %v540, %v539
        %v551 = vpack.c.b16 %v542, %v541
        %v552 = vpack.c.b16 %v544, %v543
        %561 = vmatpush.bf16.msra.mxu0 %v552
        %562 = vmatpush.bf16.msra.mxu0 %v551
        %563 = vmatpush.bf16.msra.mxu0 %v550
        %564 = vmatpush.bf16.msra.mxu0 %v549
        %565 = vmatpush.bf16.msra.mxu0 %v548
        %566 = vmatpush.bf16.msra.mxu0 %v547
        %567 = vmatpush.bf16.msra.mxu0 %v546
        %568 = vmatpush.bf16.msra.mxu0 %v545
        %569 = vmatmul.bf16.gmra.mxu0 %v509
        %v570 = vpop.f32.mrf.mxu0
        %v571 = vadd.f32 %v511, %v570
        %v572 = vpop.f32.mrf.mxu0
        %573 = vdwg.mxu0
        %574 = vadd.xlane.f32.xlu0 %v571
        %v575 = vpop.xlane.xlu0 %574
        %v576 = vmul.f32 %v571, %v571
        %577 = vadd.xlane.f32.xlu0 %v576
        %v578 = vpop.xlane.xlu0 %577
        %v579 = vmul.f32 %v575, 0.03125
        %v580 = vmul.f32 %v578, 0.03125
        %v581 = vmul.f32 %v579, %v579
        %v582 = vsub.f32 %v580, %v581
        %v583 = vmax.f32 %v582, 0.0
        %v584 = vsub.f32 %v571, %v579
        %v585 = vadd.f32 %v583, 1e-05
        %v586 = vrsqrt.pop %v585
        %v587 = vmul.f32 %v586, %v585
        %v588 = vmul.f32 %v587, %v586
        %v589 = vmul.f32 0.5, %v588
        %v590 = vsub.f32 1.5, %v589
        %v591 = vmul.f32 %v586, %v590
        %vm592 = vweird.f32 %v585
        %vm593 = vweird.f32 %v586
        %vm594 = vmor %vm592, %vm593
        %v595 = vsel %vm594, %v586, %v591
        %v596 = vmul.f32 %v584, %v595
        %s597 = sld [smem:[#allocation2 + $0x1]]
        %vm598 = vcmp.gt.f32.partialorder %v596, 0.0
        %v599 = vstv %s597
        %v600 = vmul.f32 %v599, %v596
        %v601 = vsel %vm598, %v596, %v600
        %v602 = vpack.c.bf16 %v601, %v601
        %603 = vst [vmem:[%s417] sm:$0xf] %v602
        %v604 = vld [vmem:[#allocation10] sm:$0xf]
        %v605 = vld [vmem:[#allocation10 + $0x4] sm:$0xf]
        %v606 = vld [vmem:[#allocation10 + $0x8] sm:$0xf]
        %v607 = vld [vmem:[#allocation10 + $0xc] sm:$0xf]
        %v608 = vld [vmem:[#allocation10 + $0x10] sm:$0xf]
        %v609 = vld [vmem:[#allocation10 + $0x14] sm:$0xf]
        %v610 = vld [vmem:[#allocation10 + $0x18] sm:$0xf]
        %v611 = vld [vmem:[#allocation10 + $0x1c] sm:$0xf]
        %v612 = vld [vmem:[#allocation10 + $0x20] sm:$0xf]
        %v613 = vld [vmem:[#allocation10 + $0x24] sm:$0xf]
        %v614 = vld [vmem:[#allocation10 + $0x28] sm:$0xf]
        %v615 = vld [vmem:[#allocation10 + $0x2c] sm:$0xf]
        %v616 = vld [vmem:[#allocation10 + $0x30] sm:$0xf]
        %v617 = vld [vmem:[#allocation10 + $0x34] sm:$0xf]
        %v618 = vld [vmem:[#allocation10 + $0x38] sm:$0xf]
        %v619 = vld [vmem:[#allocation10 + $0x3c] sm:$0xf]
        %v620 = vld [vmem:[%s7] sm:$0x1]
        %v622 = vperm.slane %v620, 0
        %v640 = vunpack.c.l.b16 %v604
        %v641 = vunpack.c.l.b16 %v605
        %v642 = vunpack.c.l.b16 %v606
        %v643 = vunpack.c.l.b16 %v607
        %v644 = vunpack.c.l.b16 %v608
        %v645 = vunpack.c.l.b16 %v609
        %v646 = vunpack.c.l.b16 %v610
        %v647 = vunpack.c.l.b16 %v611
        %v648 = vunpack.c.l.b16 %v612
        %v649 = vunpack.c.l.b16 %v613
        %v650 = vunpack.c.l.b16 %v614
        %v651 = vunpack.c.l.b16 %v615
        %v652 = vunpack.c.l.b16 %v616
        %v653 = vunpack.c.l.b16 %v617
        %v654 = vunpack.c.l.b16 %v618
        %v655 = vunpack.c.l.b16 %v619
        %v656 = vpack.c.b16 %v641, %v640
        %v657 = vpack.c.b16 %v643, %v642
        %v658 = vpack.c.b16 %v645, %v644
        %v659 = vpack.c.b16 %v647, %v646
        %v660 = vpack.c.b16 %v649, %v648
        %v661 = vpack.c.b16 %v651, %v650
        %v662 = vpack.c.b16 %v653, %v652
        %v663 = vpack.c.b16 %v655, %v654
        %672 = vmatpush.bf16.msra.mxu0 %v663
        %673 = vmatpush.bf16.msra.mxu0 %v662
        %674 = vmatpush.bf16.msra.mxu0 %v661
        %675 = vmatpush.bf16.msra.mxu0 %v660
        %676 = vmatpush.bf16.msra.mxu0 %v659
        %677 = vmatpush.bf16.msra.mxu0 %v658
        %678 = vmatpush.bf16.msra.mxu0 %v657
        %679 = vmatpush.bf16.msra.mxu0 %v656
        %680 = vmatmul.bf16.gmra.mxu0 %v602
        %v681 = vpop.f32.mrf.mxu0
        %v682 = vadd.f32 %v622, %v681
        %v683 = vpop.f32.mrf.mxu0
        %684 = vdwg.mxu0
        %v685 = vxor.u32 %v682, 2147483648
        %v686 = vmul.f32 %v685, 1.442695
        %v687 = vpow.pop %v686
        %v688 = vadd.f32 %v687, 1.0
        %v689 = vrcp.pop %v688
        %v690 = vmul.f32 %v688, %v689
        %v691 = vsub.f32 1.0, %v690
        %v692 = vmul.f32 %v689, %v691
        %v693 = vadd.f32 %v689, %v692
        %vm694 = vweird.f32 %v688
        %vm695 = vweird.f32 %v689
        %vm696 = vmor %vm694, %vm695
        %v697 = vsel %vm696, %v689, %v693
        %v698 = vand.u32 2147483647, %v688
        %vm699 = vcmp.eq.f32.partialorder %v698, 8.507059e+37
        %v700 = vand.u32 %v688, 2147483648
        %v701 = vor.u32 1.1754944e-38, %v700
        %v702 = vsel %vm699, %v701, %v697
        %v703 = vmul.f32 1.0, %v702
        %v704 = vpack.c.bf16 %v703, %v703
        %705 = vst [vmem:[%s424] sm:$0xf] %v704
        %s706 = sand.u32 %s214, 1
        %s707 = scalar_lea.sflag [#allocation4], %s706
        %s708 = sand.u32 %s214, 1
        %s709 = smul.addr %s708, 4
        %s710 = scalar_lea.vmem [#allocation12], %s709
        %s711 = sand.u32 %s240, 1
        %s712 = scalar_lea.sflag [#allocation14], %s711
        %s713 = sand.u32 %s240, 1
        %s714 = smul.addr %s713, 4
        %s715 = scalar_lea.vmem [#allocation13], %s714
        // Predicated region
        $region73: #{tpu_custom_call.1} parent=51 // pred_check
          %p716 = pneg %p224
        $region74: #{tpu_custom_call.1} parent=51 // pred_check_branch
          %718 = sbr.rel (%p716) target = $region76
        $region75: #{tpu_custom_call.1} parent=51 // pred_region
          %720 = vsyncadd %s707, 0
          %s721 = smul.addr %s33, 4
          %s722 = scalar_lea.hbm %s8, %s721
          %s724 = sshll.u32 %s710, 4
          %s725 = int_to_ptr.vmem [resolvable:$true] %s724
          %s726 = sshll.u32 %s722, 4
          %s727 = int_to_ptr.hbm [resolvable:$true] %s726
          %729 = dma.vmem_to_hbm [thread:$0]  %s725, 64, %s727, %s707
        $region76: #{tpu_custom_call.1} parent=51 // pred_fallthru
          _
        // Predicated region
        $region77: #{tpu_custom_call.1} parent=51 // pred_check
          %p730 = pneg %p250
        $region78: #{tpu_custom_call.1} parent=51 // pred_check_branch
          %732 = sbr.rel (%p730) target = $region80
        $region79: #{tpu_custom_call.1} parent=51 // pred_region
          %734 = vsyncadd %s712, 0
          %s735 = smul.addr %s33, 4
          %s736 = scalar_lea.hbm %s9, %s735
          %s738 = sshll.u32 %s715, 4
          %s739 = int_to_ptr.vmem [resolvable:$true] %s738
          %s740 = sshll.u32 %s736, 4
          %s741 = int_to_ptr.hbm [resolvable:$true] %s740
          %743 = dma.vmem_to_hbm [thread:$0]  %s739, 64, %s741, %s712
        $region80: #{tpu_custom_call.1} parent=51 // pred_fallthru
          _
      $region52: #{tpu_custom_call.1} parent=5 // pred_fallthru
        _
      %p744 = scmp.le.s32.totalorder 2, %s28
      // Predicated region
      $region81: #{tpu_custom_call.1} parent=5 // pred_check
        %p745 = pneg %p744
      $region82: #{tpu_custom_call.1} parent=5 // pred_check_branch
        %747 = sbr.rel (%p745) target = $region84
      $region83: #{tpu_custom_call.1} parent=5 // pred_region
        %s748 = ssub.s32 %s28, 2
        // Predicated region
        $region85: #{tpu_custom_call.1} parent=83 // pred_check
          %p749 = pneg %p230
        $region86: #{tpu_custom_call.1} parent=83 // pred_check_branch
          %751 = sbr.rel (%p749) target = $region88
        $region87: #{tpu_custom_call.1} parent=83 // pred_region
          %s752 = sand.u32 %s215, 1
          %s753 = scalar_lea.sflag [#allocation4], %s752
          %s754 = sand.u32 %s215, 1
          %s755 = smul.addr %s754, 4
          %s756 = scalar_lea.vmem [#allocation12], %s755
          %758 = dma.done %s753, 64
        $region88: #{tpu_custom_call.1} parent=83 // pred_fallthru
          _
        // Predicated region
        $region89: #{tpu_custom_call.1} parent=83 // pred_check
          %p759 = pneg %p256
        $region90: #{tpu_custom_call.1} parent=83 // pred_check_branch
          %761 = sbr.rel (%p759) target = $region92
        $region91: #{tpu_custom_call.1} parent=83 // pred_region
          %s762 = sand.u32 %s241, 1
          %s763 = scalar_lea.sflag [#allocation14], %s762
          %s764 = sand.u32 %s241, 1
          %s765 = smul.addr %s764, 4
          %s766 = scalar_lea.vmem [#allocation13], %s765
          %768 = dma.done %s763, 64
        $region92: #{tpu_custom_call.1} parent=83 // pred_fallthru
          _
      $region84: #{tpu_custom_call.1} parent=5 // pred_fallthru
        _
    $region6: #{tpu_custom_call.1} parent=1 // loop_footer
      %s32 = sadd.s32 1, %s28
    $region7: #{tpu_custom_call.1} parent=1 // loop_footer_branch
      %27 = sbr.rel target = $region3
    $region8: #{tpu_custom_call.1} parent=1 // loop_exit
      _
    %769 = vsyncpa [#allocation3], 1
    %s770 = scalar_lea.sflag [#allocation3], 1
    %771 = vsyncpa %s770, 1
    %772 = vsyncpa [#allocation8], 1
    %773 = vsyncpa [#allocation11], 1
    %774 = vsyncpa [#allocation4], 1
    %s775 = scalar_lea.sflag [#allocation4], 1
    %776 = vsyncpa %s775, 1
    %777 = vsyncpa [#allocation14], 1
    %s778 = scalar_lea.sflag [#allocation14], 1
    %779 = vsyncpa %s778, 1
    %780 = vsyncpa [#allocation5], 1
    %s781 = scalar_lea.sflag [#allocation5], 1
    %782 = vsyncpa %s781, 1

</llo_original>
